<compile_context>
chip_gen: v7x
topology: tpu7x:2x2x1
jax: 0.10.0
libtpu: 0.0.40
codegen_flags: <defaults>
</compile_context>

<pallas_src>
import functools
import math

import jax
import jax.numpy as jnp
import numpy as np
from jax.experimental import pallas as pl
from jax.experimental.pallas import tpu as pltpu


OUT_H, OUT_W = 144, 256
# The ConvTranspose2d -> flipped-3x3-same-conv rewrite is ONLY valid for:
CT_KERNEL, CT_STRIDE, CT_PADDING = 3, 1, 1


# ----------------------------------------------------------------------------
# Static adaptive-max-pool index tables (PyTorch semantics) and one-hot gathers
# ----------------------------------------------------------------------------
def _adaptive_pool_indices(in_size, out_size):
    """PyTorch adaptive pooling windows: [floor(i*I/O), ceil((i+1)*I/O))."""
    starts = np.array([(i * in_size) // out_size for i in range(out_size)])
    ends = np.array([-(-((i + 1) * in_size) // out_size) for i in range(out_size)])
    k = int(np.max(ends - starts))
    # pad windows to uniform size k by repeating the last valid index (ok for max)
    idx = np.minimum(starts[:, None] + np.arange(k)[None, :], ends[:, None] - 1)
    return idx.astype(np.int32), k


def _row_gather_onehot(in_size, out_size):
    """g[t] @ x gathers input rows idx[:, t]."""
    idx, k = _adaptive_pool_indices(in_size, out_size)        # (out, k)
    g = np.zeros((k, out_size, in_size), np.float32)
    g[np.arange(k)[:, None], np.arange(out_size)[None, :], idx.T] = 1.0
    return g, k


def _col_gather_onehot(in_size, out_size):
    """x @ g[t] gathers input cols idx[:, t]."""
    idx, k = _adaptive_pool_indices(in_size, out_size)        # (out, k)
    g = np.zeros((k, in_size, out_size), np.float32)
    g[np.arange(k)[:, None], idx.T, np.arange(out_size)[None, :]] = 1.0
    return g, k


# ----------------------------------------------------------------------------
# Fused kernel: conv1 + ReLU + conv2(=flipped conv) + adaptive max pool
# ----------------------------------------------------------------------------
def _net_fused_kernel(x_ref, w1_ref, b1_ref, w2t_ref, b2_ref, mask_ref,
                      gh_ref, gw_ref, o_ref, xcol_ref, tpad_ref, z2d_ref,
                      *, H, W):
    """One grid step == one image; all intermediates stay in VMEM.

    The padded-flat index of pixel (yy, xx) on the (H+2, W+2) grid is yy*(W+2)+xx.
    Refs:
      x_ref   : (1, Cin, L2)    zero-padded, spatially flattened input
      w1_ref  : (C1, 9*Cin)     conv1 weights, col r = (dy*3+dx)*Cin + cin
      b1_ref  : (C1, 1)
      w2t_ref : (9, C1)         conv2 effective (flipped) per-tap channel weights
      b2_ref  : (1,)            SMEM scalar
      mask_ref: (1, Nq)         1.0 on valid columns of the flat grid, 0.0 on wrap cols
      gh_ref  : (KH, OUT_H, H)  one-hot row-gather matrices
      gw_ref  : (KW, W, OUT_W)  one-hot col-gather matrices
      o_ref   : (1, OUT_H, OUT_W)
      xcol_ref: VMEM (9*Cin, Nq) im2col staging (plain stores, no concat/reshape)
      tpad_ref: VMEM (9, L2)     conv2 tap maps on the padded flat grid
      z2d_ref : VMEM (H, W)      conv2 output, dense 2-D for the pooling matmuls
    """
    Cin = x_ref.shape[1]
    Wp = W + 2
    L2 = (H + 2) * Wp
    Nq = H * Wp - 2                    # contiguous flat range covering all rows
    KH = gh_ref.shape[0]
    KW = gw_ref.shape[0]
    offsets = [(dy, dx) for dy in range(3) for dx in range(3)]

    # ---- conv1 (+ReLU): each im2col tap is ONE contiguous lane-dense slice of
    # the padded-flat input -> 9 plain stores, then a single MXU dot (K=27).
    for t, (dy, dx) in enumerate(offsets):
        s = dy * Wp + dx
        xcol_ref[Cin * t:Cin * (t + 1), :] = x_ref[0, :, s:s + Nq]
    h1 = jnp.dot(w1_ref[...], xcol_ref[...], preferred_element_type=jnp.float32)
    # bias + ReLU; the mask zeroes the 2 row-wrap columns so they later act as
    # conv2's left/right zero padding in the padded tap buffer.
    h1 = jnp.maximum(h1 + b1_ref[...], 0.0) * mask_ref[...]          # (C1, Nq)

    # ---- conv2 channel contraction on the MXU: all 9 tap maps in one dot.
    taps = jnp.dot(w2t_ref[...], h1, preferred_element_type=jnp.float32)   # (9, Nq)

    # Padded flat tap buffer: zero ONLY the tiny head/tail halo, every step
    # (megacore-safe -- scratch is per-core, so a pid==0 "zero once" would leave
    # the other core's halo uninitialised); interior is fully rewritten.
    tpad_ref[:, 0:Wp + 1] = jnp.zeros((9, Wp + 1), jnp.float32)
    tpad_ref[:, L2 - (Wp + 1):] = jnp.zeros((9, Wp + 1), jnp.float32)
    tpad_ref[:, Wp + 1:Wp + 1 + Nq] = taps

    # ---- conv2 spatial accumulation: 9 shifted contiguous slices (VPU adds).
    z = jnp.zeros((1, Nq), jnp.float32) + b2_ref[0]
    for t, (dy, dx) in enumerate(offsets):
        s = dy * Wp + dx
        z = z + tpad_ref[t:t + 1, s:s + Nq]                          # (1, Nq)

    # ---- bridge flat (row stride W+2) -> dense (H, W) for the pooling matmuls.
    for y in range(H):
        q0 = y * Wp
        z2d_ref[y:y + 1, :] = z[:, q0:q0 + W]

    # ---- AdaptiveMaxPool2d((OUT_H, OUT_W)): one-hot gathers + max, all f32
    # (exact-max property -- do not cast these to bf16).
    zz = z2d_ref[...]
    rows = jnp.dot(gh_ref[0], zz, preferred_element_type=jnp.float32)       # (Ho, W)
    for t in range(1, KH):
        rows = jnp.maximum(
            rows, jnp.dot(gh_ref[t], zz, preferred_element_type=jnp.float32))
    out = jnp.dot(rows, gw_ref[0], preferred_element_type=jnp.float32)      # (Ho, Wo)
    for t in range(1, KW):
        out = jnp.maximum(
            out, jnp.dot(rows, gw_ref[t], preferred_element_type=jnp.float32))
    o_ref[...] = out[None].astype(o_ref.dtype)                       # lane-dense store


# ----------------------------------------------------------------------------
# Wrapper: weight re-layout (trace-time) + single fused pallas_call
# ----------------------------------------------------------------------------
def net_forward(x_nchw, params):
    """x_nchw: (N, 3, H, W) float32 -> (N, 1, 144, 256), matches Net.forward."""
    w1, b1, w2, b2 = params
    N, Cin, H, W = x_nchw.shape
    C1 = w1.shape[0]
    assert w1.shape == (C1, Cin, 3, 3), w1.shape
    # Hard guard: the ConvTranspose2d -> flipped-conv rewrite is only valid for
    # kernel=3, stride=1, padding=1 (the module's fixed configuration).
    assert (CT_KERNEL, CT_STRIDE, CT_PADDING) == (3, 1, 1)
    assert w2.shape == (C1, 1, CT_KERNEL, CT_KERNEL), w2.shape

    Wp = W + 2
    L2 = (H + 2) * Wp
    Nq = H * Wp - 2

    # Zero-pad + flatten the 3-channel input once in HBM (adds <3% input bytes);
    # this makes every in-kernel im2col tap a single contiguous lane-dense slice.
    xflat = jnp.pad(x_nchw, ((0, 0), (0, 0), (1, 1), (1, 1))).reshape(N, Cin, L2)

    # conv1 weights (Cout, Cin, 3, 3) -> (C1, 27), col r = (dy*3+dx)*Cin + cin.
    w1_mat = jnp.transpose(w1, (2, 3, 1, 0)).reshape(9 * Cin, C1).T
    b1_col = b1.reshape(C1, 1)
    # ConvTranspose2d(s=1, p=1) == 3x3 same-conv with flipped kernel, in/out swapped.
    w2_taps = jnp.transpose(w2[:, 0, ::-1, ::-1], (1, 2, 0)).reshape(9, C1)
    b2_smem = b2.reshape(1)

    # Valid-column mask on the padded-flat grid (zero on the 2 row-wrap columns).
    mask = jnp.asarray((np.arange(Nq) % Wp < W).astype(np.float32)[None, :])

    gh, KH = _row_gather_onehot(H, OUT_H)                            # (KH, Ho, H)
    gw, KW = _col_gather_onehot(W, OUT_W)                            # (KW, W, Wo)
    gh = jnp.asarray(gh)
    gw = jnp.asarray(gw)

    # Rough per-step VMEM budget (bytes); raise the scoped limit only if needed
    # (v5e scoped default is 16 MiB).  Capped below v7x's 64 MiB physical VMEM.
    vmem_est = 4 * (2 * Cin * L2 + (9 * Cin + 5) * Nq + 16 * L2 + H * W
                    + 2 * C1 * Nq + 2 * OUT_H * OUT_W
                    + KH * OUT_H * H + KW * W * OUT_W + C1 * (9 * Cin + 1))
    cp = dict(dimension_semantics=("parallel",))
    if vmem_est > 12 * 1024 * 1024:
        cp["vmem_limit_bytes"] = int(min(2 * vmem_est, 64 * 1024 * 1024))

    kern = functools.partial(_net_fused_kernel, H=H, W=W)
    out = pl.pallas_call(
        kern,
        out_shape=jax.ShapeDtypeStruct((N, OUT_H, OUT_W), jnp.float32),
        grid=(N,),
        in_specs=[
            pl.BlockSpec((1, Cin, L2), lambda n: (n, 0, 0)),
            pl.BlockSpec((C1, 9 * Cin), lambda n: (0, 0)),
            pl.BlockSpec((C1, 1), lambda n: (0, 0)),
            pl.BlockSpec((9, C1), lambda n: (0, 0)),
            pl.BlockSpec(memory_space=pltpu.MemorySpace.SMEM),
            pl.BlockSpec((1, Nq), lambda n: (0, 0)),
            pl.BlockSpec((KH, OUT_H, H), lambda n: (0, 0, 0)),
            pl.BlockSpec((KW, W, OUT_W), lambda n: (0, 0, 0)),
        ],
        out_specs=pl.BlockSpec((1, OUT_H, OUT_W), lambda n: (n, 0, 0)),
        scratch_shapes=[
            pltpu.VMEM((9 * Cin, Nq), jnp.float32),   # im2col staging
            pltpu.VMEM((9, L2), jnp.float32),         # conv2 tap maps (padded flat)
            pltpu.VMEM((H, W), jnp.float32),          # conv2 output, dense 2-D
        ],
        compiler_params=pltpu.CompilerParams(**cp),
    )(xflat, w1_mat, b1_col, w2_taps, b2_smem, mask, gh, gw)
    return out[:, None, :, :]                                        # (N, 1, Ho, Wo)


# ----------------------------------------------------------------------------
# Deterministic parameters (PyTorch layouts) and an independent numpy reference
# ----------------------------------------------------------------------------
def init_params(key):
    k1, k2, k3, k4 = jax.random.split(key, 4)
    # Conv2d(3, 64, 3): weight (Cout, Cin, kh, kw), bias (Cout,)
    bound1 = 1.0 / math.sqrt(3 * 3 * 3)
    w1 = jax.random.uniform(k1, (64, 3, 3, 3), jnp.float32, -bound1, bound1)
    b1 = jax.random.uniform(k2, (64,), jnp.float32, -bound1, bound1)
    # ConvTranspose2d(64, 1, 3): weight (Cin, Cout, kh, kw), bias (Cout,)
    bound2 = 1.0 / math.sqrt(1 * 3 * 3)
    w2 = jax.random.uniform(k3, (64, 1, 3, 3), jnp.float32, -bound2, bound2)
    b2 = jax.random.uniform(k4, (1,), jnp.float32, -bound2, bound2)
    return w1, b1, w2, b2


def net_reference_numpy(x, params):
    """Pure-numpy reference straight from the PyTorch op definitions."""
    w1, b1, w2, b2 = [np.asarray(p, np.float32) for p in params]
    x = np.asarray(x, np.float32)
    N, Cin, H, W = x.shape
    C1 = w1.shape[0]
    # conv1 (3x3, pad 1) + ReLU
    xpad = np.zeros((N, Cin, H + 2, W + 2), np.float32)
    xpad[:, :, 1:H + 1, 1:W + 1] = x
    h1 = np.zeros((N, C1, H, W), np.float32)
    for dy in range(3):
        for dx in range(3):
            h1 += np.einsum("oc,nchw->nohw", w1[:, :, dy, dx],
                            xpad[:, :, dy:dy + H, dx:dx + W])
    h1 = np.maximum(h1 + b1[None, :, None, None], 0.0)
    # ConvTranspose2d(64->1, 3x3, stride 1, pad 1): scatter-add definition
    full = np.zeros((N, H + 2, W + 2), np.float32)
    for ky in range(3):
        for kx in range(3):
            full[:, ky:ky + H, kx:kx + W] += np.einsum(
                "c,nchw->nhw", w2[:, 0, ky, kx], h1)
    z = full[:, 1:H + 1, 1:W + 1] + b2.reshape(1, 1, 1)              # (N, H, W)
    # AdaptiveMaxPool2d((144, 256))
    idx_h, _ = _adaptive_pool_indices(H, OUT_H)
    idx_w, _ = _adaptive_pool_indices(W, OUT_W)
    g = z[:, idx_h[:, :, None, None], idx_w[None, None, :, :]]       # (N,Ho,KH,Wo,KW)
    return g.max(axis=(2, 4))[:, None]                               # (N,1,Ho,Wo)


if __name__ == "__main__":
    key = jax.random.PRNGKey(0)
    kx, kp = jax.random.split(key)
    x = jax.random.normal(kx, (2, 3, 16, 16), dtype=jnp.float32)     # NCHW, small
    params = init_params(kp)

    fwd = jax.jit(net_forward)
    out = fwd(x, params)
    jax.block_until_ready(out)

    assert out.shape == (2, 1, OUT_H, OUT_W), out.shape
    assert bool(jnp.all(jnp.isfinite(out)))

    ref = net_reference_numpy(x, params)
    err = float(np.max(np.abs(np.asarray(out) - ref)))
    assert err < 3e-3, f"max abs error vs reference: {err}"

    print("KERNEL_OK")
</pallas_src>

<mosaic_0001>
module attributes {stable_mosaic.version = 11 : i64} {
  func.func @_net_fused_kernel(%arg0: i32, %arg1: memref<1x3x324xf32, #tpu.memory_space<vmem>>, %arg2: memref<64x27xf32, #tpu.memory_space<vmem>>, %arg3: memref<64x1xf32, #tpu.memory_space<vmem>>, %arg4: memref<9x64xf32, #tpu.memory_space<vmem>>, %arg5: memref<1xf32, #tpu.memory_space<smem>>, %arg6: memref<1x286xf32, #tpu.memory_space<vmem>>, %arg7: memref<1x144x16xf32, #tpu.memory_space<vmem>>, %arg8: memref<1x16x256xf32, #tpu.memory_space<vmem>>, %arg9: memref<1x144x256xf32, #tpu.memory_space<vmem>>, %arg10: memref<27x286xf32, #tpu.memory_space<vmem>>, %arg11: memref<9x324xf32, #tpu.memory_space<vmem>>, %arg12: memref<16x16xf32, #tpu.memory_space<vmem>>) attributes {dimension_semantics = [#tpu.dimension_semantics<parallel>], iteration_bounds = array<i64: 2>, scalar_prefetch = 0 : i64, scratch_operands = 3 : i64, tpu.core_type = #tpu.core_type<tc>, window_params = [{transform_indices = @transform_0, window_bounds = array<i64: 1, 3, 324>}, {pipeline_mode = #tpu.pipeline_mode<synchronous>, transform_indices = @transform_1, window_bounds = array<i64: 64, 27>}, {pipeline_mode = #tpu.pipeline_mode<synchronous>, transform_indices = @transform_2, window_bounds = array<i64: 64, 1>}, {pipeline_mode = #tpu.pipeline_mode<synchronous>, transform_indices = @transform_3, window_bounds = array<i64: 9, 64>}, {transform_indices = @transform_4, window_bounds = array<i64: 1>}, {pipeline_mode = #tpu.pipeline_mode<synchronous>, transform_indices = @transform_5, window_bounds = array<i64: 1, 286>}, {pipeline_mode = #tpu.pipeline_mode<synchronous>, transform_indices = @transform_6, window_bounds = array<i64: 1, 144, 16>}, {pipeline_mode = #tpu.pipeline_mode<synchronous>, transform_indices = @transform_7, window_bounds = array<i64: 1, 16, 256>}, {transform_indices = @transform_8, window_bounds = array<i64: 1, 144, 256>}]} {
    %c0 = arith.constant 0 : index
    %c0_0 = arith.constant 0 : index
    %c0_1 = arith.constant 0 : index
    %0 = vector.load %arg1[%c0, %c0_0, %c0_1] : memref<1x3x324xf32, #tpu.memory_space<vmem>>, vector<1x3x286xf32>
    %1 = vector.shape_cast %0 : vector<1x3x286xf32> to vector<3x286xf32>
    %c0_2 = arith.constant 0 : index
    %c0_3 = arith.constant 0 : index
    %2 = vector.load %arg10[%c0_2, %c0_3] : memref<27x286xf32, #tpu.memory_space<vmem>>, vector<3x286xf32>
    tpu.vector_store %arg10[%c0_2, %c0_3], %1 {strides = array<i32>} : memref<27x286xf32, #tpu.memory_space<vmem>>, vector<3x286xf32>,
    %c0_4 = arith.constant 0 : index
    %c0_5 = arith.constant 0 : index
    %c1 = arith.constant 1 : index
    %3 = vector.load %arg1[%c0_4, %c0_5, %c1] : memref<1x3x324xf32, #tpu.memory_space<vmem>>, vector<1x3x286xf32>
    %4 = vector.shape_cast %3 : vector<1x3x286xf32> to vector<3x286xf32>
    %c3 = arith.constant 3 : index
    %c0_6 = arith.constant 0 : index
    %5 = vector.load %arg10[%c3, %c0_6] : memref<27x286xf32, #tpu.memory_space<vmem>>, vector<3x286xf32>
    tpu.vector_store %arg10[%c3, %c0_6], %4 {strides = array<i32>} : memref<27x286xf32, #tpu.memory_space<vmem>>, vector<3x286xf32>,
    %c0_7 = arith.constant 0 : index
    %c0_8 = arith.constant 0 : index
    %c2 = arith.constant 2 : index
    %6 = vector.load %arg1[%c0_7, %c0_8, %c2] : memref<1x3x324xf32, #tpu.memory_space<vmem>>, vector<1x3x286xf32>
    %7 = vector.shape_cast %6 : vector<1x3x286xf32> to vector<3x286xf32>
    %c6 = arith.constant 6 : index
    %c0_9 = arith.constant 0 : index
    %8 = vector.load %arg10[%c6, %c0_9] : memref<27x286xf32, #tpu.memory_space<vmem>>, vector<3x286xf32>
    tpu.vector_store %arg10[%c6, %c0_9], %7 {strides = array<i32>} : memref<27x286xf32, #tpu.memory_space<vmem>>, vector<3x286xf32>,
    %c0_10 = arith.constant 0 : index
    %c0_11 = arith.constant 0 : index
    %c18 = arith.constant 18 : index
    %9 = vector.load %arg1[%c0_10, %c0_11, %c18] : memref<1x3x324xf32, #tpu.memory_space<vmem>>, vector<1x3x286xf32>
    %10 = vector.shape_cast %9 : vector<1x3x286xf32> to vector<3x286xf32>
    %c9 = arith.constant 9 : index
    %c0_12 = arith.constant 0 : index
    %11 = vector.load %arg10[%c9, %c0_12] : memref<27x286xf32, #tpu.memory_space<vmem>>, vector<3x286xf32>
    tpu.vector_store %arg10[%c9, %c0_12], %10 {strides = array<i32>} : memref<27x286xf32, #tpu.memory_space<vmem>>, vector<3x286xf32>,
    %c0_13 = arith.constant 0 : index
    %c0_14 = arith.constant 0 : index
    %c19 = arith.constant 19 : index
    %12 = vector.load %arg1[%c0_13, %c0_14, %c19] : memref<1x3x324xf32, #tpu.memory_space<vmem>>, vector<1x3x286xf32>
    %13 = vector.shape_cast %12 : vector<1x3x286xf32> to vector<3x286xf32>
    %c12 = arith.constant 12 : index
    %c0_15 = arith.constant 0 : index
    %14 = vector.load %arg10[%c12, %c0_15] : memref<27x286xf32, #tpu.memory_space<vmem>>, vector<3x286xf32>
    tpu.vector_store %arg10[%c12, %c0_15], %13 {strides = array<i32>} : memref<27x286xf32, #tpu.memory_space<vmem>>, vector<3x286xf32>,
    %c0_16 = arith.constant 0 : index
    %c0_17 = arith.constant 0 : index
    %c20 = arith.constant 20 : index
    %15 = vector.load %arg1[%c0_16, %c0_17, %c20] : memref<1x3x324xf32, #tpu.memory_space<vmem>>, vector<1x3x286xf32>
    %16 = vector.shape_cast %15 : vector<1x3x286xf32> to vector<3x286xf32>
    %c15 = arith.constant 15 : index
    %c0_18 = arith.constant 0 : index
    %17 = vector.load %arg10[%c15, %c0_18] : memref<27x286xf32, #tpu.memory_space<vmem>>, vector<3x286xf32>
    tpu.vector_store %arg10[%c15, %c0_18], %16 {strides = array<i32>} : memref<27x286xf32, #tpu.memory_space<vmem>>, vector<3x286xf32>,
    %c0_19 = arith.constant 0 : index
    %c0_20 = arith.constant 0 : index
    %c36 = arith.constant 36 : index
    %18 = vector.load %arg1[%c0_19, %c0_20, %c36] : memref<1x3x324xf32, #tpu.memory_space<vmem>>, vector<1x3x286xf32>
    %19 = vector.shape_cast %18 : vector<1x3x286xf32> to vector<3x286xf32>
    %c18_21 = arith.constant 18 : index
    %c0_22 = arith.constant 0 : index
    %20 = vector.load %arg10[%c18_21, %c0_22] : memref<27x286xf32, #tpu.memory_space<vmem>>, vector<3x286xf32>
    tpu.vector_store %arg10[%c18_21, %c0_22], %19 {strides = array<i32>} : memref<27x286xf32, #tpu.memory_space<vmem>>, vector<3x286xf32>,
    %c0_23 = arith.constant 0 : index
    %c0_24 = arith.constant 0 : index
    %c37 = arith.constant 37 : index
    %21 = vector.load %arg1[%c0_23, %c0_24, %c37] : memref<1x3x324xf32, #tpu.memory_space<vmem>>, vector<1x3x286xf32>
    %22 = vector.shape_cast %21 : vector<1x3x286xf32> to vector<3x286xf32>
    %c21 = arith.constant 21 : index
    %c0_25 = arith.constant 0 : index
    %23 = vector.load %arg10[%c21, %c0_25] : memref<27x286xf32, #tpu.memory_space<vmem>>, vector<3x286xf32>
    tpu.vector_store %arg10[%c21, %c0_25], %22 {strides = array<i32>} : memref<27x286xf32, #tpu.memory_space<vmem>>, vector<3x286xf32>,
    %c0_26 = arith.constant 0 : index
    %c0_27 = arith.constant 0 : index
    %c38 = arith.constant 38 : index
    %24 = vector.load %arg1[%c0_26, %c0_27, %c38] : memref<1x3x324xf32, #tpu.memory_space<vmem>>, vector<1x3x286xf32>
    %25 = vector.shape_cast %24 : vector<1x3x286xf32> to vector<3x286xf32>
    %c24 = arith.constant 24 : index
    %c0_28 = arith.constant 0 : index
    %26 = vector.load %arg10[%c24, %c0_28] : memref<27x286xf32, #tpu.memory_space<vmem>>, vector<3x286xf32>
    tpu.vector_store %arg10[%c24, %c0_28], %25 {strides = array<i32>} : memref<27x286xf32, #tpu.memory_space<vmem>>, vector<3x286xf32>,
    %c0_29 = arith.constant 0 : index
    %c0_30 = arith.constant 0 : index
    %27 = vector.load %arg2[%c0_29, %c0_30] : memref<64x27xf32, #tpu.memory_space<vmem>>, vector<64x27xf32>
    %c0_31 = arith.constant 0 : index
    %c0_32 = arith.constant 0 : index
    %28 = vector.load %arg10[%c0_31, %c0_32] : memref<27x286xf32, #tpu.memory_space<vmem>>, vector<27x286xf32>
    %cst = arith.constant dense<0.000000e+00> : vector<64x286xf32>
    %29 = tpu.matmul %27, %28, %cst {dimension_numbers = #tpu.dot_dimension_numbers<[1], [0], [0], [1], [0, 0, 1, 1], [], []>} : vector<64x27xf32>, vector<27x286xf32>, vector<64x286xf32> -> vector<64x286xf32>
    %c0_33 = arith.constant 0 : index
    %c0_34 = arith.constant 0 : index
    %30 = vector.load %arg3[%c0_33, %c0_34] : memref<64x1xf32, #tpu.memory_space<vmem>>, vector<64x1xf32>
    %31 = vector.broadcast %30 : vector<64x1xf32> to vector<64x286xf32>
    %32 = arith.addf %29, %31 : vector<64x286xf32>
    %cst_35 = arith.constant 0.000000e+00 : f32
    %33 = vector.broadcast %cst_35 : f32 to vector<64x286xf32>
    %34 = arith.maximumf %32, %33 : vector<64x286xf32>
    %c0_36 = arith.constant 0 : index
    %c0_37 = arith.constant 0 : index
    %35 = vector.load %arg6[%c0_36, %c0_37] : memref<1x286xf32, #tpu.memory_space<vmem>>, vector<1x286xf32>
    %36 = vector.broadcast %35 : vector<1x286xf32> to vector<64x286xf32>
    %37 = arith.mulf %34, %36 : vector<64x286xf32>
    %c0_38 = arith.constant 0 : index
    %c0_39 = arith.constant 0 : index
    %38 = vector.load %arg4[%c0_38, %c0_39] : memref<9x64xf32, #tpu.memory_space<vmem>>, vector<9x64xf32>
    %cst_40 = arith.constant dense<0.000000e+00> : vector<9x286xf32>
    %39 = tpu.matmul %38, %37, %cst_40 {dimension_numbers = #tpu.dot_dimension_numbers<[1], [0], [0], [1], [0, 0, 1, 1], [], []>} : vector<9x64xf32>, vector<64x286xf32>, vector<9x286xf32> -> vector<9x286xf32>
    %cst_41 = arith.constant 0.000000e+00 : f32
    %40 = vector.broadcast %cst_41 : f32 to vector<9x19xf32>
    %c0_42 = arith.constant 0 : index
    %c0_43 = arith.constant 0 : index
    %41 = vector.load %arg11[%c0_42, %c0_43] : memref<9x324xf32, #tpu.memory_space<vmem>>, vector<9x19xf32>
    tpu.vector_store %arg11[%c0_42, %c0_43], %40 {strides = array<i32>} : memref<9x324xf32, #tpu.memory_space<vmem>>, vector<9x19xf32>,
    %cst_44 = arith.constant 0.000000e+00 : f32
    %42 = vector.broadcast %cst_44 : f32 to vector<9x19xf32>
    %c0_45 = arith.constant 0 : index
    %c305 = arith.constant 305 : index
    %43 = vector.load %arg11[%c0_45, %c305] : memref<9x324xf32, #tpu.memory_space<vmem>>, vector<9x19xf32>
    tpu.vector_store %arg11[%c0_45, %c305], %42 {strides = array<i32>} : memref<9x324xf32, #tpu.memory_space<vmem>>, vector<9x19xf32>,
    %c0_46 = arith.constant 0 : index
    %c19_47 = arith.constant 19 : index
    %44 = vector.load %arg11[%c0_46, %c19_47] : memref<9x324xf32, #tpu.memory_space<vmem>>, vector<9x286xf32>
    tpu.vector_store %arg11[%c0_46, %c19_47], %39 {strides = array<i32>} : memref<9x324xf32, #tpu.memory_space<vmem>>, vector<9x286xf32>,
    %cst_48 = arith.constant 0.000000e+00 : f32
    %45 = vector.broadcast %cst_48 : f32 to vector<1x286xf32>
    %c0_49 = arith.constant 0 : index
    %46 = memref.load %arg5[%c0_49] : memref<1xf32, #tpu.memory_space<smem>>
    %47 = vector.broadcast %46 : f32 to vector<1x286xf32>
    %48 = arith.addf %45, %47 : vector<1x286xf32>
    %c0_50 = arith.constant 0 : index
    %c0_51 = arith.constant 0 : index
    %49 = vector.load %arg11[%c0_50, %c0_51] : memref<9x324xf32, #tpu.memory_space<vmem>>, vector<1x286xf32>
    %50 = arith.addf %48, %49 : vector<1x286xf32>
    %c1_52 = arith.constant 1 : index
    %c1_53 = arith.constant 1 : index
    %51 = vector.load %arg11[%c1_52, %c1_53] : memref<9x324xf32, #tpu.memory_space<vmem>>, vector<1x286xf32>
    %52 = arith.addf %50, %51 : vector<1x286xf32>
    %c2_54 = arith.constant 2 : index
    %c2_55 = arith.constant 2 : index
    %53 = vector.load %arg11[%c2_54, %c2_55] : memref<9x324xf32, #tpu.memory_space<vmem>>, vector<1x286xf32>
    %54 = arith.addf %52, %53 : vector<1x286xf32>
    %c3_56 = arith.constant 3 : index
    %c18_57 = arith.constant 18 : index
    %55 = vector.load %arg11[%c3_56, %c18_57] : memref<9x324xf32, #tpu.memory_space<vmem>>, vector<1x286xf32>
    %56 = arith.addf %54, %55 : vector<1x286xf32>
    %c4 = arith.constant 4 : index
    %c19_58 = arith.constant 19 : index
    %57 = vector.load %arg11[%c4, %c19_58] : memref<9x324xf32, #tpu.memory_space<vmem>>, vector<1x286xf32>
    %58 = arith.addf %56, %57 : vector<1x286xf32>
    %c5 = arith.constant 5 : index
    %c20_59 = arith.constant 20 : index
    %59 = vector.load %arg11[%c5, %c20_59] : memref<9x324xf32, #tpu.memory_space<vmem>>, vector<1x286xf32>
    %60 = arith.addf %58, %59 : vector<1x286xf32>
    %c6_60 = arith.constant 6 : index
    %c36_61 = arith.constant 36 : index
    %61 = vector.load %arg11[%c6_60, %c36_61] : memref<9x324xf32, #tpu.memory_space<vmem>>, vector<1x286xf32>
    %62 = arith.addf %60, %61 : vector<1x286xf32>
    %c7 = arith.constant 7 : index
    %c37_62 = arith.constant 37 : index
    %63 = vector.load %arg11[%c7, %c37_62] : memref<9x324xf32, #tpu.memory_space<vmem>>, vector<1x286xf32>
    %64 = arith.addf %62, %63 : vector<1x286xf32>
    %c8 = arith.constant 8 : index
    %c38_63 = arith.constant 38 : index
    %65 = vector.load %arg11[%c8, %c38_63] : memref<9x324xf32, #tpu.memory_space<vmem>>, vector<1x286xf32>
    %66 = arith.addf %64, %65 : vector<1x286xf32>
    %67 = vector.extract_strided_slice %66 {offsets = [0, 0], sizes = [1, 16], strides = [1, 1]} : vector<1x286xf32> to vector<1x16xf32>
    %c0_64 = arith.constant 0 : index
    %c0_65 = arith.constant 0 : index
    %68 = vector.load %arg12[%c0_64, %c0_65] : memref<16x16xf32, #tpu.memory_space<vmem>>, vector<1x16xf32>
    tpu.vector_store %arg12[%c0_64, %c0_65], %67 {strides = array<i32>} : memref<16x16xf32, #tpu.memory_space<vmem>>, vector<1x16xf32>,
    %69 = vector.extract_strided_slice %66 {offsets = [0, 18], sizes = [1, 16], strides = [1, 1]} : vector<1x286xf32> to vector<1x16xf32>
    %c1_66 = arith.constant 1 : index
    %c0_67 = arith.constant 0 : index
    %70 = vector.load %arg12[%c1_66, %c0_67] : memref<16x16xf32, #tpu.memory_space<vmem>>, vector<1x16xf32>
    tpu.vector_store %arg12[%c1_66, %c0_67], %69 {strides = array<i32>} : memref<16x16xf32, #tpu.memory_space<vmem>>, vector<1x16xf32>,
    %71 = vector.extract_strided_slice %66 {offsets = [0, 36], sizes = [1, 16], strides = [1, 1]} : vector<1x286xf32> to vector<1x16xf32>
    %c2_68 = arith.constant 2 : index
    %c0_69 = arith.constant 0 : index
    %72 = vector.load %arg12[%c2_68, %c0_69] : memref<16x16xf32, #tpu.memory_space<vmem>>, vector<1x16xf32>
    tpu.vector_store %arg12[%c2_68, %c0_69], %71 {strides = array<i32>} : memref<16x16xf32, #tpu.memory_space<vmem>>, vector<1x16xf32>,
    %73 = vector.extract_strided_slice %66 {offsets = [0, 54], sizes = [1, 16], strides = [1, 1]} : vector<1x286xf32> to vector<1x16xf32>
    %c3_70 = arith.constant 3 : index
    %c0_71 = arith.constant 0 : index
    %74 = vector.load %arg12[%c3_70, %c0_71] : memref<16x16xf32, #tpu.memory_space<vmem>>, vector<1x16xf32>
    tpu.vector_store %arg12[%c3_70, %c0_71], %73 {strides = array<i32>} : memref<16x16xf32, #tpu.memory_space<vmem>>, vector<1x16xf32>,
    %75 = vector.extract_strided_slice %66 {offsets = [0, 72], sizes = [1, 16], strides = [1, 1]} : vector<1x286xf32> to vector<1x16xf32>
    %c4_72 = arith.constant 4 : index
    %c0_73 = arith.constant 0 : index
    %76 = vector.load %arg12[%c4_72, %c0_73] : memref<16x16xf32, #tpu.memory_space<vmem>>, vector<1x16xf32>
    tpu.vector_store %arg12[%c4_72, %c0_73], %75 {strides = array<i32>} : memref<16x16xf32, #tpu.memory_space<vmem>>, vector<1x16xf32>,
    %77 = vector.extract_strided_slice %66 {offsets = [0, 90], sizes = [1, 16], strides = [1, 1]} : vector<1x286xf32> to vector<1x16xf32>
    %c5_74 = arith.constant 5 : index
    %c0_75 = arith.constant 0 : index
    %78 = vector.load %arg12[%c5_74, %c0_75] : memref<16x16xf32, #tpu.memory_space<vmem>>, vector<1x16xf32>
    tpu.vector_store %arg12[%c5_74, %c0_75], %77 {strides = array<i32>} : memref<16x16xf32, #tpu.memory_space<vmem>>, vector<1x16xf32>,
    %79 = vector.extract_strided_slice %66 {offsets = [0, 108], sizes = [1, 16], strides = [1, 1]} : vector<1x286xf32> to vector<1x16xf32>
    %c6_76 = arith.constant 6 : index
    %c0_77 = arith.constant 0 : index
    %80 = vector.load %arg12[%c6_76, %c0_77] : memref<16x16xf32, #tpu.memory_space<vmem>>, vector<1x16xf32>
    tpu.vector_store %arg12[%c6_76, %c0_77], %79 {strides = array<i32>} : memref<16x16xf32, #tpu.memory_space<vmem>>, vector<1x16xf32>,
    %81 = vector.extract_strided_slice %66 {offsets = [0, 126], sizes = [1, 16], strides = [1, 1]} : vector<1x286xf32> to vector<1x16xf32>
    %c7_78 = arith.constant 7 : index
    %c0_79 = arith.constant 0 : index
    %82 = vector.load %arg12[%c7_78, %c0_79] : memref<16x16xf32, #tpu.memory_space<vmem>>, vector<1x16xf32>
    tpu.vector_store %arg12[%c7_78, %c0_79], %81 {strides = array<i32>} : memref<16x16xf32, #tpu.memory_space<vmem>>, vector<1x16xf32>,
    %83 = vector.extract_strided_slice %66 {offsets = [0, 144], sizes = [1, 16], strides = [1, 1]} : vector<1x286xf32> to vector<1x16xf32>
    %c8_80 = arith.constant 8 : index
    %c0_81 = arith.constant 0 : index
    %84 = vector.load %arg12[%c8_80, %c0_81] : memref<16x16xf32, #tpu.memory_space<vmem>>, vector<1x16xf32>
    tpu.vector_store %arg12[%c8_80, %c0_81], %83 {strides = array<i32>} : memref<16x16xf32, #tpu.memory_space<vmem>>, vector<1x16xf32>,
    %85 = vector.extract_strided_slice %66 {offsets = [0, 162], sizes = [1, 16], strides = [1, 1]} : vector<1x286xf32> to vector<1x16xf32>
    %c9_82 = arith.constant 9 : index
    %c0_83 = arith.constant 0 : index
    %86 = vector.load %arg12[%c9_82, %c0_83] : memref<16x16xf32, #tpu.memory_space<vmem>>, vector<1x16xf32>
    tpu.vector_store %arg12[%c9_82, %c0_83], %85 {strides = array<i32>} : memref<16x16xf32, #tpu.memory_space<vmem>>, vector<1x16xf32>,
    %87 = vector.extract_strided_slice %66 {offsets = [0, 180], sizes = [1, 16], strides = [1, 1]} : vector<1x286xf32> to vector<1x16xf32>
    %c10 = arith.constant 10 : index
    %c0_84 = arith.constant 0 : index
    %88 = vector.load %arg12[%c10, %c0_84] : memref<16x16xf32, #tpu.memory_space<vmem>>, vector<1x16xf32>
    tpu.vector_store %arg12[%c10, %c0_84], %87 {strides = array<i32>} : memref<16x16xf32, #tpu.memory_space<vmem>>, vector<1x16xf32>,
    %89 = vector.extract_strided_slice %66 {offsets = [0, 198], sizes = [1, 16], strides = [1, 1]} : vector<1x286xf32> to vector<1x16xf32>
    %c11 = arith.constant 11 : index
    %c0_85 = arith.constant 0 : index
    %90 = vector.load %arg12[%c11, %c0_85] : memref<16x16xf32, #tpu.memory_space<vmem>>, vector<1x16xf32>
    tpu.vector_store %arg12[%c11, %c0_85], %89 {strides = array<i32>} : memref<16x16xf32, #tpu.memory_space<vmem>>, vector<1x16xf32>,
    %91 = vector.extract_strided_slice %66 {offsets = [0, 216], sizes = [1, 16], strides = [1, 1]} : vector<1x286xf32> to vector<1x16xf32>
    %c12_86 = arith.constant 12 : index
    %c0_87 = arith.constant 0 : index
    %92 = vector.load %arg12[%c12_86, %c0_87] : memref<16x16xf32, #tpu.memory_space<vmem>>, vector<1x16xf32>
    tpu.vector_store %arg12[%c12_86, %c0_87], %91 {strides = array<i32>} : memref<16x16xf32, #tpu.memory_space<vmem>>, vector<1x16xf32>,
    %93 = vector.extract_strided_slice %66 {offsets = [0, 234], sizes = [1, 16], strides = [1, 1]} : vector<1x286xf32> to vector<1x16xf32>
    %c13 = arith.constant 13 : index
    %c0_88 = arith.constant 0 : index
    %94 = vector.load %arg12[%c13, %c0_88] : memref<16x16xf32, #tpu.memory_space<vmem>>, vector<1x16xf32>
    tpu.vector_store %arg12[%c13, %c0_88], %93 {strides = array<i32>} : memref<16x16xf32, #tpu.memory_space<vmem>>, vector<1x16xf32>,
    %95 = vector.extract_strided_slice %66 {offsets = [0, 252], sizes = [1, 16], strides = [1, 1]} : vector<1x286xf32> to vector<1x16xf32>
    %c14 = arith.constant 14 : index
    %c0_89 = arith.constant 0 : index
    %96 = vector.load %arg12[%c14, %c0_89] : memref<16x16xf32, #tpu.memory_space<vmem>>, vector<1x16xf32>
    tpu.vector_store %arg12[%c14, %c0_89], %95 {strides = array<i32>} : memref<16x16xf32, #tpu.memory_space<vmem>>, vector<1x16xf32>,
    %97 = vector.extract_strided_slice %66 {offsets = [0, 270], sizes = [1, 16], strides = [1, 1]} : vector<1x286xf32> to vector<1x16xf32>
    %c15_90 = arith.constant 15 : index
    %c0_91 = arith.constant 0 : index
    %98 = vector.load %arg12[%c15_90, %c0_91] : memref<16x16xf32, #tpu.memory_space<vmem>>, vector<1x16xf32>
    tpu.vector_store %arg12[%c15_90, %c0_91], %97 {strides = array<i32>} : memref<16x16xf32, #tpu.memory_space<vmem>>, vector<1x16xf32>,
    %c0_92 = arith.constant 0 : index
    %c0_93 = arith.constant 0 : index
    %99 = vector.load %arg12[%c0_92, %c0_93] : memref<16x16xf32, #tpu.memory_space<vmem>>, vector<16x16xf32>
    %c0_94 = arith.constant 0 : index
    %c0_95 = arith.constant 0 : index
    %c0_96 = arith.constant 0 : index
    %100 = vector.load %arg7[%c0_94, %c0_95, %c0_96] : memref<1x144x16xf32, #tpu.memory_space<vmem>>, vector<1x144x16xf32>
    %101 = vector.shape_cast %100 : vector<1x144x16xf32> to vector<144x16xf32>
    %cst_97 = arith.constant dense<0.000000e+00> : vector<144x16xf32>
    %102 = tpu.matmul %101, %99, %cst_97 {dimension_numbers = #tpu.dot_dimension_numbers<[1], [0], [0], [1], [0, 0, 1, 1], [], []>} : vector<144x16xf32>, vector<16x16xf32>, vector<144x16xf32> -> vector<144x16xf32>
    %c0_98 = arith.constant 0 : index
    %c0_99 = arith.constant 0 : index
    %c0_100 = arith.constant 0 : index
    %103 = vector.load %arg8[%c0_98, %c0_99, %c0_100] : memref<1x16x256xf32, #tpu.memory_space<vmem>>, vector<1x16x256xf32>
    %104 = vector.shape_cast %103 : vector<1x16x256xf32> to vector<16x256xf32>
    %cst_101 = arith.constant dense<0.000000e+00> : vector<144x256xf32>
    %105 = tpu.matmul %102, %104, %cst_101 {dimension_numbers = #tpu.dot_dimension_numbers<[1], [0], [0], [1], [0, 0, 1, 1], [], []>} : vector<144x16xf32>, vector<16x256xf32>, vector<144x256xf32> -> vector<144x256xf32>
    %106 = vector.shape_cast %105 : vector<144x256xf32> to vector<1x144x256xf32>
    %c0_102 = arith.constant 0 : index
    %c0_103 = arith.constant 0 : index
    %c0_104 = arith.constant 0 : index
    %107 = vector.load %arg9[%c0_102, %c0_103, %c0_104] : memref<1x144x256xf32, #tpu.memory_space<vmem>>, vector<1x144x256xf32>
    tpu.vector_store %arg9[%c0_102, %c0_103, %c0_104], %106 {strides = array<i32>} : memref<1x144x256xf32, #tpu.memory_space<vmem>>, vector<1x144x256xf32>,
    return
  }
  func.func @transform_0(%arg0: i32) -> (i32, i32, i32) {
    %c0_i32 = arith.constant 0 : i32
    %c0_i32_0 = arith.constant 0 : i32
    %c0_i32_1 = arith.constant 0 : i32
    return %arg0, %c0_i32, %c0_i32_0 : i32, i32, i32
  }
  func.func @transform_1(%arg0: i32) -> (i32, i32) {
    %c0_i32 = arith.constant 0 : i32
    %c0_i32_0 = arith.constant 0 : i32
    %c0_i32_1 = arith.constant 0 : i32
    return %c0_i32, %c0_i32_0 : i32, i32
  }
  func.func @transform_2(%arg0: i32) -> (i32, i32) {
    %c0_i32 = arith.constant 0 : i32
    %c0_i32_0 = arith.constant 0 : i32
    %c0_i32_1 = arith.constant 0 : i32
    return %c0_i32, %c0_i32_0 : i32, i32
  }
  func.func @transform_3(%arg0: i32) -> (i32, i32) {
    %c0_i32 = arith.constant 0 : i32
    %c0_i32_0 = arith.constant 0 : i32
    %c0_i32_1 = arith.constant 0 : i32
    return %c0_i32, %c0_i32_0 : i32, i32
  }
  func.func @transform_4(%arg0: i32) -> i32 {
    %c0_i32 = arith.constant 0 : i32
    %c0_i32_0 = arith.constant 0 : i32
    return %c0_i32 : i32
  }
  func.func @transform_5(%arg0: i32) -> (i32, i32) {
    %c0_i32 = arith.constant 0 : i32
    %c0_i32_0 = arith.constant 0 : i32
    %c0_i32_1 = arith.constant 0 : i32
    return %c0_i32, %c0_i32_0 : i32, i32
  }
  func.func @transform_6(%arg0: i32) -> (i32, i32, i32) {
    %c0_i32 = arith.constant 0 : i32
    %c0_i32_0 = arith.constant 0 : i32
    %c0_i32_1 = arith.constant 0 : i32
    %c0_i32_2 = arith.constant 0 : i32
    return %c0_i32, %c0_i32_0, %c0_i32_1 : i32, i32, i32
  }
  func.func @transform_7(%arg0: i32) -> (i32, i32, i32) {
    %c0_i32 = arith.constant 0 : i32
    %c0_i32_0 = arith.constant 0 : i32
    %c0_i32_1 = arith.constant 0 : i32
    %c0_i32_2 = arith.constant 0 : i32
    return %c0_i32, %c0_i32_0, %c0_i32_1 : i32, i32, i32
  }
  func.func @transform_8(%arg0: i32) -> (i32, i32, i32) {
    %c0_i32 = arith.constant 0 : i32
    %c0_i32_0 = arith.constant 0 : i32
    %c0_i32_1 = arith.constant 0 : i32
    return %arg0, %c0_i32, %c0_i32_0 : i32, i32, i32
  }
}

</mosaic_0001>

<llo_original>
// kernel: net_forward.1
$region0: #{net_forward.1}
  #allocation0 [shape = 'u32[]', space=smem, size = 0x4, offset = 0x4, fixed_abs, tag = 'smem constant byte address 0x4 - core index']
  #allocation1 [shape = 'u32[144,128]{1,0:T(1,128)}', space=vmem, size = 0x12000, scoped, tag = 'internal scratch']
  #allocation2 [shape = 'f32[27,286]{1,0:T(8,128)}', space=vmem, size = 0xc000, scoped, tag = 'scratch operand']
  #allocation3 [shape = 'f32[9,324]{1,0:T(8,128)}', space=vmem, size = 0x6000, scoped, tag = 'scratch operand']
  #allocation4 [shape = 'f32[16,16]{1,0:T(8,128)}', space=vmem, size = 0x2000, scoped, tag = 'scratch operand']
  #allocation5 [shape = 'f32[1]{0:T(128)S(6)}', space=smem, size = 0x200, scoped, tag = 'scoped memory for net_forward.1']
  %s0 = inlined_call_operand.vmem [shape: f32[2,3,324], index: 0, kind: input, shape index: {}]
  %s1 = inlined_call_operand.vmem [shape: f32[64,27], index: 1, kind: input, shape index: {}]
  %s2 = inlined_call_operand.vmem [shape: f32[64,1], index: 2, kind: input, shape index: {}]
  %s3 = inlined_call_operand.vmem [shape: f32[9,64], index: 3, kind: input, shape index: {}]
  %s4 = inlined_call_operand.<no memory space> [shape: f32[1], index: 4, kind: input, shape index: {}]
  %s5 = inlined_call_operand.vmem [shape: f32[1,286], index: 5, kind: input, shape index: {}]
  %s6 = inlined_call_operand.vmem [shape: f32[1,144,16], index: 6, kind: input, shape index: {}]
  %s7 = inlined_call_operand.vmem [shape: f32[1,16,256], index: 7, kind: input, shape index: {}]
  %s8 = inlined_call_operand.hbm [shape: f32[2,144,256], index: 8, kind: output, shape index: {}]
  %s9 = sld [smem:[#allocation0]]
  $region65: #{net_forward.1} parent=0
    _
  %s11 = ssub.s32 1, %s9
  %s12 = scalar_select 0, %s11, %s9
  %13 = sst [smem:[#allocation5]] %s4
  $region1: #{net_forward.1} parent=0
    #allocation6 [shape = 'u8[294912]{0}', space=vmem, size = 0x48000, scoped, tag = 'output window, operand 0']
    #allocation7 [shape = 's32[2]{0}', space=sflag, size = 0x8, scoped, tag = 'scoped memory for net_forward.1']
    %14 = vsyncpa [#allocation7], 0
    %s15 = scalar_lea.sflag [#allocation7], 1
    %16 = vsyncpa %s15, 0
    loop: start=0, step=1, limit=4
    $region2: #{net_forward.1} parent=1 // loop_pre_header
      _
    $region3: #{net_forward.1} parent=1 // loop_header
      %s18 = sphi 0, %s22
      %p19 = scmp.ge.s32.totalorder %s18, 4
      %s28 = sphi 0, %s30
      %s31 = sphi 0, %s28
      %s32 = sphi 0, %s31
      %s48 = sphi 0, %s32
      %s52 = sphi 0, %s52
      %s54 = sphi 0, %s52
      %s55 = sphi 0, %s54
      %s69 = sphi 0, %s55
      %s73 = sphi 0, %s73
      %s75 = sphi 0, %s73
      %s76 = sphi 0, %s75
      %s90 = sphi 0, %s76
      %s94 = sphi 0, %s94
      %s96 = sphi 0, %s94
      %s97 = sphi 0, %s96
      %s111 = sphi 0, %s97
      %s115 = sphi 0, %s115
      %s117 = sphi 0, %s115
      %s118 = sphi 0, %s117
      %s132 = sphi 0, %s118
      %s136 = sphi 0, %s136
      %s138 = sphi 0, %s136
      %s139 = sphi 0, %s138
      %s153 = sphi 0, %s139
      %s157 = sphi 0, %s157
      %s159 = sphi 0, %s157
      %s160 = sphi 0, %s159
      %s174 = sphi 0, %s160
      %s178 = sphi 0, %s178
      %s180 = sphi 0, %s178
      %s181 = sphi 0, %s180
      %s195 = sphi 0, %s181
      %s201 = sphi 0, %s203
      %s204 = sphi 0, %s201
      %s205 = sphi 0, %s204
      %s221 = sphi 0, %s205
    $region4: #{net_forward.1} parent=1 // loop_header_branch
      %21 = sbr.rel (%p19) target = $region8
    $region5: #{net_forward.1} parent=1 // loop_body
      %s23 = ssub.s32 %s18, 1
      %s24 = ssub.s32 %s18, 2
      %s25 = sadd.s32 %s18, 1
      %s26 = ssub.s32 %s18, %s25
      %p27 = scmp.eq.s32.totalorder %s26, 0
      %s29 = sadd.s32 %s28, 1
      %s30 = scalar_select %p27, %s28, %s29
      %p33 = pneg %p27
      %p34 = scmp.eq.s32.totalorder %s18, 1
      %p35 = por %p33, %p34
      %p36 = scmp.ne.s32.totalorder %s28, %s31
      %p37 = scmp.eq.s32.totalorder %s18, 0
      %p38 = por %p36, %p37
      %p39 = scmp.ne.s32.totalorder %s28, %s31
      %p40 = scmp.eq.s32.totalorder %s23, 1
      %p41 = por %p39, %p40
      %p42 = scmp.ne.s32.totalorder %s31, %s32
      %p43 = scmp.eq.s32.totalorder %s23, 0
      %p44 = por %p42, %p43
      %p45 = scmp.ne.s32.totalorder %s31, %s32
      %p46 = scmp.eq.s32.totalorder %s24, 1
      %p47 = por %p45, %p46
      %p49 = scmp.ne.s32.totalorder %s32, %s48
      %p50 = scmp.eq.s32.totalorder %s24, 0
      %p51 = por %p49, %p50
      %s53 = sadd.s32 %s52, 1
      %p56 = scmp.eq.s32.totalorder %s18, 1
      %p57 = scmp.ne.s32.totalorder %s52, %s54
      %p58 = scmp.eq.s32.totalorder %s18, 0
      %p59 = por %p57, %p58
      %p60 = scmp.ne.s32.totalorder %s52, %s54
      %p61 = scmp.eq.s32.totalorder %s23, 1
      %p62 = por %p60, %p61
      %p63 = scmp.ne.s32.totalorder %s54, %s55
      %p64 = scmp.eq.s32.totalorder %s23, 0
      %p65 = por %p63, %p64
      %p66 = scmp.ne.s32.totalorder %s54, %s55
      %p67 = scmp.eq.s32.totalorder %s24, 1
      %p68 = por %p66, %p67
      %p70 = scmp.ne.s32.totalorder %s55, %s69
      %p71 = scmp.eq.s32.totalorder %s24, 0
      %p72 = por %p70, %p71
      %s74 = sadd.s32 %s73, 1
      %p77 = scmp.eq.s32.totalorder %s18, 1
      %p78 = scmp.ne.s32.totalorder %s73, %s75
      %p79 = scmp.eq.s32.totalorder %s18, 0
      %p80 = por %p78, %p79
      %p81 = scmp.ne.s32.totalorder %s73, %s75
      %p82 = scmp.eq.s32.totalorder %s23, 1
      %p83 = por %p81, %p82
      %p84 = scmp.ne.s32.totalorder %s75, %s76
      %p85 = scmp.eq.s32.totalorder %s23, 0
      %p86 = por %p84, %p85
      %p87 = scmp.ne.s32.totalorder %s75, %s76
      %p88 = scmp.eq.s32.totalorder %s24, 1
      %p89 = por %p87, %p88
      %p91 = scmp.ne.s32.totalorder %s76, %s90
      %p92 = scmp.eq.s32.totalorder %s24, 0
      %p93 = por %p91, %p92
      %s95 = sadd.s32 %s94, 1
      %p98 = scmp.eq.s32.totalorder %s18, 1
      %p99 = scmp.ne.s32.totalorder %s94, %s96
      %p100 = scmp.eq.s32.totalorder %s18, 0
      %p101 = por %p99, %p100
      %p102 = scmp.ne.s32.totalorder %s94, %s96
      %p103 = scmp.eq.s32.totalorder %s23, 1
      %p104 = por %p102, %p103
      %p105 = scmp.ne.s32.totalorder %s96, %s97
      %p106 = scmp.eq.s32.totalorder %s23, 0
      %p107 = por %p105, %p106
      %p108 = scmp.ne.s32.totalorder %s96, %s97
      %p109 = scmp.eq.s32.totalorder %s24, 1
      %p110 = por %p108, %p109
      %p112 = scmp.ne.s32.totalorder %s97, %s111
      %p113 = scmp.eq.s32.totalorder %s24, 0
      %p114 = por %p112, %p113
      %s116 = sadd.s32 %s115, 1
      %p119 = scmp.eq.s32.totalorder %s18, 1
      %p120 = scmp.ne.s32.totalorder %s115, %s117
      %p121 = scmp.eq.s32.totalorder %s18, 0
      %p122 = por %p120, %p121
      %p123 = scmp.ne.s32.totalorder %s115, %s117
      %p124 = scmp.eq.s32.totalorder %s23, 1
      %p125 = por %p123, %p124
      %p126 = scmp.ne.s32.totalorder %s117, %s118
      %p127 = scmp.eq.s32.totalorder %s23, 0
      %p128 = por %p126, %p127
      %p129 = scmp.ne.s32.totalorder %s117, %s118
      %p130 = scmp.eq.s32.totalorder %s24, 1
      %p131 = por %p129, %p130
      %p133 = scmp.ne.s32.totalorder %s118, %s132
      %p134 = scmp.eq.s32.totalorder %s24, 0
      %p135 = por %p133, %p134
      %s137 = sadd.s32 %s136, 1
      %p140 = scmp.eq.s32.totalorder %s18, 1
      %p141 = scmp.ne.s32.totalorder %s136, %s138
      %p142 = scmp.eq.s32.totalorder %s18, 0
      %p143 = por %p141, %p142
      %p144 = scmp.ne.s32.totalorder %s136, %s138
      %p145 = scmp.eq.s32.totalorder %s23, 1
      %p146 = por %p144, %p145
      %p147 = scmp.ne.s32.totalorder %s138, %s139
      %p148 = scmp.eq.s32.totalorder %s23, 0
      %p149 = por %p147, %p148
      %p150 = scmp.ne.s32.totalorder %s138, %s139
      %p151 = scmp.eq.s32.totalorder %s24, 1
      %p152 = por %p150, %p151
      %p154 = scmp.ne.s32.totalorder %s139, %s153
      %p155 = scmp.eq.s32.totalorder %s24, 0
      %p156 = por %p154, %p155
      %s158 = sadd.s32 %s157, 1
      %p161 = scmp.eq.s32.totalorder %s18, 1
      %p162 = scmp.ne.s32.totalorder %s157, %s159
      %p163 = scmp.eq.s32.totalorder %s18, 0
      %p164 = por %p162, %p163
      %p165 = scmp.ne.s32.totalorder %s157, %s159
      %p166 = scmp.eq.s32.totalorder %s23, 1
      %p167 = por %p165, %p166
      %p168 = scmp.ne.s32.totalorder %s159, %s160
      %p169 = scmp.eq.s32.totalorder %s23, 0
      %p170 = por %p168, %p169
      %p171 = scmp.ne.s32.totalorder %s159, %s160
      %p172 = scmp.eq.s32.totalorder %s24, 1
      %p173 = por %p171, %p172
      %p175 = scmp.ne.s32.totalorder %s160, %s174
      %p176 = scmp.eq.s32.totalorder %s24, 0
      %p177 = por %p175, %p176
      %s179 = sadd.s32 %s178, 1
      %p182 = scmp.eq.s32.totalorder %s18, 1
      %p183 = scmp.ne.s32.totalorder %s178, %s180
      %p184 = scmp.eq.s32.totalorder %s18, 0
      %p185 = por %p183, %p184
      %p186 = scmp.ne.s32.totalorder %s178, %s180
      %p187 = scmp.eq.s32.totalorder %s23, 1
      %p188 = por %p186, %p187
      %p189 = scmp.ne.s32.totalorder %s180, %s181
      %p190 = scmp.eq.s32.totalorder %s23, 0
      %p191 = por %p189, %p190
      %p192 = scmp.ne.s32.totalorder %s180, %s181
      %p193 = scmp.eq.s32.totalorder %s24, 1
      %p194 = por %p192, %p193
      %p196 = scmp.ne.s32.totalorder %s181, %s195
      %p197 = scmp.eq.s32.totalorder %s24, 0
      %p198 = por %p196, %p197
      %s199 = ssub.s32 %s18, %s25
      %p200 = scmp.eq.s32.totalorder %s199, 0
      %s202 = sadd.s32 %s201, 1
      %s203 = scalar_select %p200, %s201, %s202
      %p206 = pneg %p200
      %p207 = scmp.eq.s32.totalorder %s18, 1
      %p208 = por %p206, %p207
      %p209 = scmp.ne.s32.totalorder %s201, %s204
      %p210 = scmp.eq.s32.totalorder %s18, 0
      %p211 = por %p209, %p210
      %p212 = scmp.ne.s32.totalorder %s201, %s204
      %p213 = scmp.eq.s32.totalorder %s23, 1
      %p214 = por %p212, %p213
      %p215 = scmp.ne.s32.totalorder %s204, %s205
      %p216 = scmp.eq.s32.totalorder %s23, 0
      %p217 = por %p215, %p216
      %p218 = scmp.ne.s32.totalorder %s204, %s205
      %p219 = scmp.eq.s32.totalorder %s24, 1
      %p220 = por %p218, %p219
      %p222 = scmp.ne.s32.totalorder %s205, %s221
      %p223 = scmp.eq.s32.totalorder %s24, 0
      %p224 = por %p222, %p223
      %p225 = scmp.le.s32.totalorder 1, %s18
      %p226 = scmp.lt.s32.totalorder %s18, 3
      %p227 = pnand %p225, %p226
      %p228 = pneg %p227
      // Predicated region
      $region9: #{net_forward.1} parent=5 // pred_check
        _
      $region10: #{net_forward.1} parent=5 // pred_check_branch
        %230 = sbr.rel (%p227) target = $region12
      $region11: #{net_forward.1} parent=5 // pred_region
        %s231 = ssub.s32 %s18, 1
        // Predicated region
        $region13: #{net_forward.1} parent=11 // pred_check
          %p232 = pneg %p65
        $region14: #{net_forward.1} parent=11 // pred_check_branch
          %234 = sbr.rel (%p232) target = $region16
        $region15: #{net_forward.1} parent=11 // pred_region
          _
        $region16: #{net_forward.1} parent=11 // pred_fallthru
          _
        // Predicated region
        $region17: #{net_forward.1} parent=11 // pred_check
          %p235 = pneg %p86
        $region18: #{net_forward.1} parent=11 // pred_check_branch
          %237 = sbr.rel (%p235) target = $region20
        $region19: #{net_forward.1} parent=11 // pred_region
          _
        $region20: #{net_forward.1} parent=11 // pred_fallthru
          _
        // Predicated region
        $region21: #{net_forward.1} parent=11 // pred_check
          %p238 = pneg %p107
        $region22: #{net_forward.1} parent=11 // pred_check_branch
          %240 = sbr.rel (%p238) target = $region24
        $region23: #{net_forward.1} parent=11 // pred_region
          _
        $region24: #{net_forward.1} parent=11 // pred_fallthru
          _
        // Predicated region
        $region25: #{net_forward.1} parent=11 // pred_check
          %p241 = pneg %p128
        $region26: #{net_forward.1} parent=11 // pred_check_branch
          %243 = sbr.rel (%p241) target = $region28
        $region27: #{net_forward.1} parent=11 // pred_region
          _
        $region28: #{net_forward.1} parent=11 // pred_fallthru
          _
        // Predicated region
        $region29: #{net_forward.1} parent=11 // pred_check
          %p244 = pneg %p149
        $region30: #{net_forward.1} parent=11 // pred_check_branch
          %246 = sbr.rel (%p244) target = $region32
        $region31: #{net_forward.1} parent=11 // pred_region
          _
        $region32: #{net_forward.1} parent=11 // pred_fallthru
          _
        // Predicated region
        $region33: #{net_forward.1} parent=11 // pred_check
          %p247 = pneg %p170
        $region34: #{net_forward.1} parent=11 // pred_check_branch
          %249 = sbr.rel (%p247) target = $region36
        $region35: #{net_forward.1} parent=11 // pred_region
          _
        $region36: #{net_forward.1} parent=11 // pred_fallthru
          _
        // Predicated region
        $region37: #{net_forward.1} parent=11 // pred_check
          %p250 = pneg %p191
        $region38: #{net_forward.1} parent=11 // pred_check_branch
          %252 = sbr.rel (%p250) target = $region40
        $region39: #{net_forward.1} parent=11 // pred_region
          _
        $region40: #{net_forward.1} parent=11 // pred_fallthru
          _
      $region12: #{net_forward.1} parent=5 // pred_fallthru
        _
      %p253 = scmp.lt.s32.totalorder %s18, 2
      // Predicated region
      $region41: #{net_forward.1} parent=5 // pred_check
        %p254 = pneg %p253
      $region42: #{net_forward.1} parent=5 // pred_check_branch
        %256 = sbr.rel (%p254) target = $region44
      $region43: #{net_forward.1} parent=5 // pred_region
        // Predicated region
        $region45: #{net_forward.1} parent=43 // pred_check
          %p257 = pneg %p38
        $region46: #{net_forward.1} parent=43 // pred_check_branch
          %259 = sbr.rel (%p257) target = $region48
        $region47: #{net_forward.1} parent=43 // pred_region
          %p260 = scmp.lt.s32.totalorder %s18, 1
          %s261 = scalar_select %p260, %s18, 1
          %s262 = smul.addr %s261, 3
          %s263 = smul.addr %s262, 4
          %s264 = scalar_lea.vmem %s0, %s263
        $region48: #{net_forward.1} parent=43 // pred_fallthru
          _
      $region44: #{net_forward.1} parent=5 // pred_fallthru
        _
      %p265 = scmp.le.s32.totalorder 1, %s18
      %p266 = scmp.lt.s32.totalorder %s18, 3
      %p267 = pnand %p265, %p266
      %p268 = pneg %p267
      // Predicated region
      $region49: #{net_forward.1} parent=5 // pred_check
        _
      $region50: #{net_forward.1} parent=5 // pred_check_branch
        %270 = sbr.rel (%p267) target = $region52
      $region51: #{net_forward.1} parent=5 // pred_region
        %s271 = ssub.s32 %s18, 1
        %p272 = scmp.lt.s32.totalorder %s23, 1
        %s273 = scalar_select %p272, %s23, 1
        %s274 = smul.addr %s273, 3
        %s275 = smul.addr %s274, 4
        %s276 = scalar_lea.vmem %s0, %s275
        %p277 = pneg %p44
        %p278 = pneg %p41
        %p279 = pneg %p65
        %p280 = pneg %p62
        %p281 = pneg %p86
        %p282 = pneg %p83
        %p283 = pneg %p107
        %p284 = pneg %p104
        %p285 = pneg %p128
        %p286 = pneg %p125
        %p287 = pneg %p149
        %p288 = pneg %p146
        %p289 = pneg %p170
        %p290 = pneg %p167
        %p291 = pneg %p191
        %p292 = pneg %p188
        %p293 = pneg %p217
        %p294 = pneg %p214
        %s295 = sand.u32 %s204, 1
        %s296 = scalar_lea.sflag [#allocation7], %s295
        %s297 = sand.u32 %s204, 1
        %s298 = smul.addr %s297, 288
        %s299 = scalar_lea.vmem [#allocation6], %s298
        %p300 = scmp.lt.s32.totalorder %s23, 1
        %s301 = scalar_select %p300, %s23, 1
        %s302 = smul.addr %s301, 3
        %s303 = smul.addr %s302, 4
        %s304 = scalar_lea.vmem %s0, %s303
        %v305 = vld [vmem:[%s304] sm:$0x77]
        %v306 = vld [vmem:[%s304 + $0x8] sm:$0x7]
        %v308 = vcombine.high %v305, %v305
        %310 = vst [vmem:[#allocation2] sm:$0x7] %v305
        %311 = vst [vmem:[#allocation2 + $0x8] sm:$0x7] %v308
        %vm312 = vcmask 239616
        %313 = vst.msk [vmem:[#allocation2 + $0x10] sm:$0x7] %vm312, %v306
        %v314 = vld [vmem:[%s304] sm:$0x77]
        %v315 = vld [vmem:[%s304 + $0x8] sm:$0x7]
        %v318 = vcombine.high %v314, %v314
        %v319 = vrot.slane %v314, 5
        %v320 = vrot.slane %v318, 5
        %v321 = vrot.slane %v315, 5
        %322 = vrot.lane.b32.xlu0 %v319, 127
        %v323 = vpop.permute.xlu0 %322
        %324 = vrot.lane.b32.xlu0 %v320, 127
        %v325 = vpop.permute.xlu0 %324
        %326 = vrot.lane.b32.xlu0 %v321, 127
        %v327 = vpop.permute.xlu0 %326
        %vm328 = vcmask 1039360
        %v329 = vsel %vm328, %v323, %v325
        %v330 = vsel %vm328, %v325, %v327
        %334 = vst [vmem:[#allocation2] sm:$0x38] %v329
        %335 = vst [vmem:[#allocation2 + $0x8] sm:$0x38] %v330
        %vm336 = vcmask 242691
        %337 = vst.msk [vmem:[#allocation2 + $0x10] sm:$0x38] %vm336, %v327
        %v338 = vld [vmem:[%s304] sm:$0x77]
        %v339 = vld [vmem:[%s304 + $0x8] sm:$0x7]
        %v342 = vcombine.high %v338, %v338
        %v343 = vrot.slane %v338, 2
        %v344 = vrot.slane %v342, 2
        %v345 = vrot.slane %v339, 2
        %346 = vrot.lane.b32.xlu0 %v343, 126
        %v347 = vpop.permute.xlu0 %346
        %348 = vrot.lane.b32.xlu0 %v344, 126
        %v349 = vpop.permute.xlu0 %348
        %350 = vrot.lane.b32.xlu0 %v345, 126
        %v351 = vpop.permute.xlu0 %350
        %vm352 = vcmask 1031168
        %v353 = vsel %vm352, %v347, %v349
        %v354 = vsel %vm352, %v349, %v351
        %358 = vst [vmem:[#allocation2] sm:$0xc0] %v353
        %359 = vst [vmem:[#allocation2 + $0x8] sm:$0xc0] %v354
        %vm360 = vcmask 244742
        %361 = vst.msk [vmem:[#allocation2 + $0x10] sm:$0xc0] %vm360, %v351
        %362 = vst [vmem:[#allocation2 + $0x18] sm:$0x1] %v353
        %363 = vst [vmem:[#allocation2 + $0x20] sm:$0x1] %v354
        %vm364 = vcmask 237568
        %365 = vst.msk [vmem:[#allocation2 + $0x28] sm:$0x1] %vm364, %v351
        %v366 = vld [vmem:[%s304] sm:$0x77]
        %v367 = vld [vmem:[%s304 + $0x8] sm:$0x7]
        %v370 = vcombine.high %v366, %v366
        %v371 = vrot.slane %v366, 7
        %v372 = vrot.slane %v370, 7
        %v373 = vrot.slane %v367, 7
        %374 = vrot.lane.b32.xlu0 %v371, 110
        %v375 = vpop.permute.xlu0 %374
        %376 = vrot.lane.b32.xlu0 %v372, 110
        %v377 = vpop.permute.xlu0 %376
        %378 = vrot.lane.b32.xlu0 %v373, 110
        %v379 = vpop.permute.xlu0 %378
        %vm380 = vcmask 900096
        %v381 = vsel %vm380, %v375, %v377
        %v382 = vsel %vm380, %v377, %v379
        %386 = vst [vmem:[#allocation2 + $0x18] sm:$0xe] %v381
        %387 = vst [vmem:[#allocation2 + $0x20] sm:$0xe] %v382
        %vm388 = vcmask 240641
        %389 = vst.msk [vmem:[#allocation2 + $0x28] sm:$0xe] %vm388, %v379
        %v390 = vld [vmem:[%s304] sm:$0x77]
        %v391 = vld [vmem:[%s304 + $0x8] sm:$0x7]
        %v394 = vcombine.low %v390, %v390
        %v395 = vcombine.low %v391, %v391
        %396 = vrot.lane.b32.xlu0 %v394, 109
        %v397 = vpop.permute.xlu0 %396
        %398 = vrot.lane.b32.xlu0 %v390, 109
        %v399 = vpop.permute.xlu0 %398
        %400 = vrot.lane.b32.xlu0 %v395, 109
        %v401 = vpop.permute.xlu0 %400
        %vm402 = vcmask 891904
        %v403 = vsel %vm402, %v397, %v399
        %v404 = vsel %vm402, %v399, %v401
        %408 = vst [vmem:[#allocation2 + $0x18] sm:$0x70] %v403
        %409 = vst [vmem:[#allocation2 + $0x20] sm:$0x70] %v404
        %vm410 = vcmask 243716
        %411 = vst.msk [vmem:[#allocation2 + $0x28] sm:$0x70] %vm410, %v401
        %v412 = vld [vmem:[%s304] sm:$0x77]
        %v413 = vld [vmem:[%s304 + $0x8] sm:$0x7]
        %v416 = vcombine.high %v412, %v412
        %v417 = vrot.slane %v412, 1
        %v418 = vrot.slane %v416, 1
        %v419 = vrot.slane %v413, 1
        %420 = vrot.lane.b32.xlu0 %v417, 108
        %v421 = vpop.permute.xlu0 %420
        %422 = vrot.lane.b32.xlu0 %v418, 108
        %v423 = vpop.permute.xlu0 %422
        %424 = vrot.lane.b32.xlu0 %v419, 108
        %v425 = vpop.permute.xlu0 %424
        %vm426 = vcmask 883712
        %v427 = vsel %vm426, %v421, %v423
        %v428 = vsel %vm426, %v423, %v425
        %432 = vst [vmem:[#allocation2 + $0x18] sm:$0x80] %v427
        %433 = vst [vmem:[#allocation2 + $0x20] sm:$0x80] %v428
        %vm434 = vcmask 244743
        %435 = vst.msk [vmem:[#allocation2 + $0x28] sm:$0x80] %vm434, %v425
        %436 = vst [vmem:[#allocation2 + $0x30] sm:$0x3] %v427
        %437 = vst [vmem:[#allocation2 + $0x38] sm:$0x3] %v428
        %vm438 = vcmask 238592
        %439 = vst.msk [vmem:[#allocation2 + $0x40] sm:$0x3] %vm438, %v425
        %v440 = vld [vmem:[%s304] sm:$0x77]
        %v441 = vld [vmem:[%s304 + $0x8] sm:$0x7]
        %v444 = vcombine.high %v440, %v440
        %v445 = vrot.slane %v440, 6
        %v446 = vrot.slane %v444, 6
        %v447 = vrot.slane %v441, 6
        %448 = vrot.lane.b32.xlu0 %v445, 92
        %v449 = vpop.permute.xlu0 %448
        %450 = vrot.lane.b32.xlu0 %v446, 92
        %v451 = vpop.permute.xlu0 %450
        %452 = vrot.lane.b32.xlu0 %v447, 92
        %v453 = vpop.permute.xlu0 %452
        %vm454 = vcmask 752640
        %v455 = vsel %vm454, %v449, %v451
        %v456 = vsel %vm454, %v451, %v453
        %460 = vst [vmem:[#allocation2 + $0x30] sm:$0x1c] %v455
        %461 = vst [vmem:[#allocation2 + $0x38] sm:$0x1c] %v456
        %vm462 = vcmask 241666
        %463 = vst.msk [vmem:[#allocation2 + $0x40] sm:$0x1c] %vm462, %v453
        %v464 = vld [vmem:[%s304] sm:$0x77]
        %v465 = vld [vmem:[%s304 + $0x8] sm:$0x7]
        %v468 = vcombine.high %v464, %v464
        %v469 = vrot.slane %v464, 3
        %v470 = vrot.slane %v468, 3
        %v471 = vrot.slane %v465, 3
        %472 = vrot.lane.b32.xlu0 %v469, 91
        %v473 = vpop.permute.xlu0 %472
        %474 = vrot.lane.b32.xlu0 %v470, 91
        %v475 = vpop.permute.xlu0 %474
        %476 = vrot.lane.b32.xlu0 %v471, 91
        %v477 = vpop.permute.xlu0 %476
        %vm478 = vcmask 744448
        %v479 = vsel %vm478, %v473, %v475
        %v480 = vsel %vm478, %v475, %v477
        %484 = vst [vmem:[#allocation2 + $0x30] sm:$0xe0] %v479
        %485 = vst [vmem:[#allocation2 + $0x38] sm:$0xe0] %v480
        %vm486 = vcmask 244741
        %487 = vst.msk [vmem:[#allocation2 + $0x40] sm:$0xe0] %vm486, %v477
        %v488 = vld [vmem:[%s304] sm:$0x77]
        %v489 = vld [vmem:[%s304 + $0x8] sm:$0x7]
        %v492 = vcombine.high %v488, %v488
        %493 = vrot.lane.b32.xlu0 %v488, 90
        %v494 = vpop.permute.xlu0 %493
        %495 = vrot.lane.b32.xlu0 %v492, 90
        %v496 = vpop.permute.xlu0 %495
        %497 = vrot.lane.b32.xlu0 %v489, 90
        %v498 = vpop.permute.xlu0 %497
        %vm499 = vcmask 736256
        %v500 = vsel %vm499, %v494, %v496
        %v501 = vsel %vm499, %v496, %v498
        %505 = vst [vmem:[#allocation2 + $0x48] sm:$0x7] %v500
        %506 = vst [vmem:[#allocation2 + $0x50] sm:$0x7] %v501
        %507 = vst.msk [vmem:[#allocation2 + $0x58] sm:$0x7] %vm312, %v498
        %v508 = vld [vmem:[%s1] sm:$0xff]
        %v509 = vld [vmem:[%s1 + $0x8] sm:$0xff]
        %v510 = vld [vmem:[%s1 + $0x10] sm:$0xff]
        %v511 = vld [vmem:[%s1 + $0x18] sm:$0xff]
        %v512 = vld [vmem:[%s1 + $0x20] sm:$0xff]
        %v513 = vld [vmem:[%s1 + $0x28] sm:$0xff]
        %v514 = vld [vmem:[%s1 + $0x30] sm:$0xff]
        %v515 = vld [vmem:[%s1 + $0x38] sm:$0xff]
        %v516 = vld [vmem:[#allocation2] sm:$0xff]
        %v517 = vld [vmem:[#allocation2 + $0x8] sm:$0xff]
        %v518 = vld [vmem:[#allocation2 + $0x10] sm:$0xff]
        %v519 = vld [vmem:[#allocation2 + $0x18] sm:$0xff]
        %v520 = vld [vmem:[#allocation2 + $0x20] sm:$0xff]
        %v521 = vld [vmem:[#allocation2 + $0x28] sm:$0xff]
        %v522 = vld [vmem:[#allocation2 + $0x30] sm:$0xff]
        %v523 = vld [vmem:[#allocation2 + $0x38] sm:$0xff]
        %v524 = vld [vmem:[#allocation2 + $0x40] sm:$0xff]
        %v525 = vld [vmem:[#allocation2 + $0x48] sm:$0x7]
        %v526 = vld [vmem:[#allocation2 + $0x50] sm:$0x7]
        %v527 = vld [vmem:[#allocation2 + $0x58] sm:$0x7]
        %v528 = vld [vmem:[%s2] sm:$0xff]
        %v529 = vld [vmem:[%s2 + $0x8] sm:$0xff]
        %v530 = vld [vmem:[%s2 + $0x10] sm:$0xff]
        %v531 = vld [vmem:[%s2 + $0x18] sm:$0xff]
        %v532 = vld [vmem:[%s2 + $0x20] sm:$0xff]
        %v533 = vld [vmem:[%s2 + $0x28] sm:$0xff]
        %v534 = vld [vmem:[%s2 + $0x30] sm:$0xff]
        %v535 = vld [vmem:[%s2 + $0x38] sm:$0xff]
        %537 = vset.pattern.permute.xlu0 0
        %538 = vperm.xlu0 %537, %v528
        %v539 = vpop.permute.xlu0 %538
        %542 = vset.pattern.permute.xlu0 0
        %543 = vperm.xlu0 %542, %v529
        %v544 = vpop.permute.xlu0 %543
        %547 = vset.pattern.permute.xlu0 0
        %548 = vperm.xlu0 %547, %v530
        %v549 = vpop.permute.xlu0 %548
        %552 = vset.pattern.permute.xlu0 0
        %553 = vperm.xlu0 %552, %v531
        %v554 = vpop.permute.xlu0 %553
        %557 = vset.pattern.permute.xlu0 0
        %558 = vperm.xlu0 %557, %v532
        %v559 = vpop.permute.xlu0 %558
        %562 = vset.pattern.permute.xlu0 0
        %563 = vperm.xlu0 %562, %v533
        %v564 = vpop.permute.xlu0 %563
        %567 = vset.pattern.permute.xlu0 0
        %568 = vperm.xlu0 %567, %v534
        %v569 = vpop.permute.xlu0 %568
        %572 = vset.pattern.permute.xlu0 0
        %573 = vperm.xlu0 %572, %v535
        %v574 = vpop.permute.xlu0 %573
        %vm576 = vcmask 220160
        %v578 = vsel %vm576, %v508, 0
        %v581 = vsel %vm576, %v509, 0
        %v584 = vsel %vm576, %v510, 0
        %v587 = vsel %vm576, %v511, 0
        %v590 = vsel %vm576, %v512, 0
        %v593 = vsel %vm576, %v513, 0
        %v596 = vsel %vm576, %v514, 0
        %v599 = vsel %vm576, %v515, 0
        %vm601 = vcmask 1042432
        %v603 = vsel %vm601, %v525, 0
        %v606 = vsel %vm601, %v526, 0
        %v609 = vsel %vm601, %v527, 0
        %611 = vmatprep.subr.mxu0 %v517
        %612 = vmatpush1.msra.mxu0 %v516
        %613 = vmatprep.subr.mxu0 %v520
        %614 = vmatpush1.msra.mxu0 %v519
        %615 = vmatprep.subr.mxu0 %v523
        %616 = vmatpush1.msra.mxu0 %v522
        %617 = vmatprep.subr.mxu0 %v606
        %618 = vmatpush1.msra.mxu0 %v603
        %619 = vmatprep.subr.mxu0 0.0
        %620 = vmatpush1.msra.mxu0 0.0
        %621 = vmatprep.subr.mxu0 0.0
        %622 = vmatpush1.msra.mxu0 0.0
        %623 = vmatprep.subr.mxu0 0.0
        %624 = vmatpush1.msra.mxu0 0.0
        %625 = vmatprep.subr.mxu0 0.0
        %626 = vmatpush1.msra.mxu0 0.0
        %627 = vmatprep.subr.mxu0 0.0
        %628 = vmatpush1.msra.mxu0 0.0
        %629 = vmatprep.subr.mxu0 0.0
        %630 = vmatpush1.msra.mxu0 0.0
        %631 = vmatprep.subr.mxu0 0.0
        %632 = vmatpush1.msra.mxu0 0.0
        %633 = vmatprep.subr.mxu0 0.0
        %634 = vmatpush1.msra.mxu0 0.0
        %635 = vmatprep.subr.mxu0 0.0
        %636 = vmatpush1.msra.mxu0 0.0
        %637 = vmatprep.subr.mxu0 0.0
        %638 = vmatpush1.msra.mxu0 0.0
        %639 = vmatprep.subr.mxu0 0.0
        %640 = vmatpush1.msra.mxu0 0.0
        %641 = vmatprep.subr.mxu0 0.0
        %642 = vmatpush1.msra.mxu0 0.0
        %643 = vmatprep.subr.mxu0 0.0
        %644 = vmatpush1.msra.mxu0 0.0
        %645 = vmatprep.subr.mxu0 0.0
        %646 = vmatpush1.msra.mxu0 0.0
        %647 = vmatprep.subr.mxu0 0.0
        %648 = vmatpush1.msra.mxu0 0.0
        %649 = vmatprep.subr.mxu0 0.0
        %650 = vmatpush1.msra.mxu0 0.0
        %651 = vmatprep.subr.mxu0 0.0
        %652 = vmatpush1.msra.mxu0 0.0
        %653 = vmatprep.subr.mxu0 0.0
        %654 = vmatpush1.msra.mxu0 0.0
        %655 = vmatprep.subr.mxu0 0.0
        %656 = vmatpush1.msra.mxu0 0.0
        %657 = vmatprep.subr.mxu0 0.0
        %658 = vmatpush1.msra.mxu0 0.0
        %659 = vmatprep.subr.mxu0 0.0
        %660 = vmatpush1.msra.mxu0 0.0
        %661 = vmatprep.subr.mxu0 0.0
        %662 = vmatpush1.msra.mxu0 0.0
        %663 = vmatprep.subr.mxu0 0.0
        %664 = vmatpush1.msra.mxu0 0.0
        %665 = vmatprep.subr.mxu0 0.0
        %666 = vmatpush1.msra.mxu0 0.0
        %667 = vmatprep.subr.mxu0 0.0
        %668 = vmatpush1.msra.mxu0 0.0
        %669 = vmatprep.subr.mxu0 0.0
        %670 = vmatpush1.msra.mxu0 0.0
        %671 = vmatprep.subr.mxu0 0.0
        %672 = vmatpush1.msra.mxu0 0.0
        %673 = vmatprep.subr.mxu0 0.0
        %674 = vmatpush1.msra.mxu0 0.0
        %675 = vmatprep.mubr.f32.mxu0 0.0
        %676 = vmatmul.mubr.f32.gmra.mrb[0].mxu0 %v578
        %v677 = vpop.f32.mrb[0].mxu0
        %v678 = vadd.f32 %v539, %v677
        %v679 = vpop.f32.mrb[0].mxu0
        %v680 = vadd.f32 %v539, %v679
        %681 = vmatprep.mubr.f32.mxu0 0.0
        %682 = vmatmul.mubr.f32.gmra.mrb[0].mxu0 %v581
        %v683 = vpop.f32.mrb[0].mxu0
        %v684 = vadd.f32 %v544, %v683
        %v685 = vpop.f32.mrb[0].mxu0
        %v686 = vadd.f32 %v544, %v685
        %687 = vmatprep.mubr.f32.mxu0 0.0
        %688 = vmatmul.mubr.f32.gmra.mrb[0].mxu0 %v584
        %v689 = vpop.f32.mrb[0].mxu0
        %v690 = vadd.f32 %v549, %v689
        %v691 = vpop.f32.mrb[0].mxu0
        %v692 = vadd.f32 %v549, %v691
        %693 = vmatprep.mubr.f32.mxu0 0.0
        %694 = vmatmul.mubr.f32.gmra.mrb[0].mxu0 %v587
        %v695 = vpop.f32.mrb[0].mxu0
        %v696 = vadd.f32 %v554, %v695
        %v697 = vpop.f32.mrb[0].mxu0
        %v698 = vadd.f32 %v554, %v697
        %699 = vmatprep.mubr.f32.mxu0 0.0
        %700 = vmatmul.mubr.f32.gmra.mrb[0].mxu0 %v590
        %v701 = vpop.f32.mrb[0].mxu0
        %v702 = vadd.f32 %v559, %v701
        %v703 = vpop.f32.mrb[0].mxu0
        %v704 = vadd.f32 %v559, %v703
        %705 = vmatprep.mubr.f32.mxu0 0.0
        %706 = vmatmul.mubr.f32.gmra.mrb[0].mxu0 %v593
        %v707 = vpop.f32.mrb[0].mxu0
        %v708 = vadd.f32 %v564, %v707
        %v709 = vpop.f32.mrb[0].mxu0
        %v710 = vadd.f32 %v564, %v709
        %711 = vmatprep.mubr.f32.mxu0 0.0
        %712 = vmatmul.mubr.f32.gmra.mrb[0].mxu0 %v596
        %v713 = vpop.f32.mrb[0].mxu0
        %v714 = vadd.f32 %v569, %v713
        %v715 = vpop.f32.mrb[0].mxu0
        %v716 = vadd.f32 %v569, %v715
        %717 = vmatprep.mubr.f32.mxu0 0.0
        %718 = vmatmul.mubr.f32.gmra.mrb[0].mxu0 %v599
        %v719 = vpop.f32.mrb[0].mxu0
        %v720 = vadd.f32 %v574, %v719
        %v721 = vpop.f32.mrb[0].mxu0
        %v722 = vadd.f32 %v574, %v721
        %723 = vdwg.mxu0
        %724 = vmatprep.subr.mxu0 0.0
        %725 = vmatpush1.msra.mxu0 %v518
        %726 = vmatprep.subr.mxu0 0.0
        %727 = vmatpush1.msra.mxu0 %v521
        %728 = vmatprep.subr.mxu0 0.0
        %729 = vmatpush1.msra.mxu0 %v524
        %730 = vmatprep.subr.mxu0 0.0
        %731 = vmatpush1.msra.mxu0 %v609
        %732 = vmatprep.subr.mxu0 0.0
        %733 = vmatpush1.msra.mxu0 0.0
        %734 = vmatprep.subr.mxu0 0.0
        %735 = vmatpush1.msra.mxu0 0.0
        %736 = vmatprep.subr.mxu0 0.0
        %737 = vmatpush1.msra.mxu0 0.0
        %738 = vmatprep.subr.mxu0 0.0
        %739 = vmatpush1.msra.mxu0 0.0
        %740 = vmatprep.subr.mxu0 0.0
        %741 = vmatpush1.msra.mxu0 0.0
        %742 = vmatprep.subr.mxu0 0.0
        %743 = vmatpush1.msra.mxu0 0.0
        %744 = vmatprep.subr.mxu0 0.0
        %745 = vmatpush1.msra.mxu0 0.0
        %746 = vmatprep.subr.mxu0 0.0
        %747 = vmatpush1.msra.mxu0 0.0
        %748 = vmatprep.subr.mxu0 0.0
        %749 = vmatpush1.msra.mxu0 0.0
        %750 = vmatprep.subr.mxu0 0.0
        %751 = vmatpush1.msra.mxu0 0.0
        %752 = vmatprep.subr.mxu0 0.0
        %753 = vmatpush1.msra.mxu0 0.0
        %754 = vmatprep.subr.mxu0 0.0
        %755 = vmatpush1.msra.mxu0 0.0
        %756 = vmatprep.subr.mxu0 0.0
        %757 = vmatpush1.msra.mxu0 0.0
        %758 = vmatprep.subr.mxu0 0.0
        %759 = vmatpush1.msra.mxu0 0.0
        %760 = vmatprep.subr.mxu0 0.0
        %761 = vmatpush1.msra.mxu0 0.0
        %762 = vmatprep.subr.mxu0 0.0
        %763 = vmatpush1.msra.mxu0 0.0
        %764 = vmatprep.subr.mxu0 0.0
        %765 = vmatpush1.msra.mxu0 0.0
        %766 = vmatprep.subr.mxu0 0.0
        %767 = vmatpush1.msra.mxu0 0.0
        %768 = vmatprep.subr.mxu0 0.0
        %769 = vmatpush1.msra.mxu0 0.0
        %770 = vmatprep.subr.mxu0 0.0
        %771 = vmatpush1.msra.mxu0 0.0
        %772 = vmatprep.subr.mxu0 0.0
        %773 = vmatpush1.msra.mxu0 0.0
        %774 = vmatprep.subr.mxu0 0.0
        %775 = vmatpush1.msra.mxu0 0.0
        %776 = vmatprep.subr.mxu0 0.0
        %777 = vmatpush1.msra.mxu0 0.0
        %778 = vmatprep.subr.mxu0 0.0
        %779 = vmatpush1.msra.mxu0 0.0
        %780 = vmatprep.subr.mxu0 0.0
        %781 = vmatpush1.msra.mxu0 0.0
        %782 = vmatprep.subr.mxu0 0.0
        %783 = vmatpush1.msra.mxu0 0.0
        %784 = vmatprep.subr.mxu0 0.0
        %785 = vmatpush1.msra.mxu0 0.0
        %786 = vmatprep.subr.mxu0 0.0
        %787 = vmatpush1.msra.mxu0 0.0
        %788 = vmatprep.mubr.f32.mxu0 0.0
        %789 = vmatmul.mubr.f32.gmra.mrb[0].mxu0 %v578
        %v790 = vpop.f32.mrb[0].mxu0
        %v791 = vadd.f32 %v539, %v790
        %v792 = vpop.f32.mrb[0].mxu0
        %793 = vmatprep.mubr.f32.mxu0 0.0
        %794 = vmatmul.mubr.f32.gmra.mrb[0].mxu0 %v581
        %v795 = vpop.f32.mrb[0].mxu0
        %v796 = vadd.f32 %v544, %v795
        %v797 = vpop.f32.mrb[0].mxu0
        %798 = vmatprep.mubr.f32.mxu0 0.0
        %799 = vmatmul.mubr.f32.gmra.mrb[0].mxu0 %v584
        %v800 = vpop.f32.mrb[0].mxu0
        %v801 = vadd.f32 %v549, %v800
        %v802 = vpop.f32.mrb[0].mxu0
        %803 = vmatprep.mubr.f32.mxu0 0.0
        %804 = vmatmul.mubr.f32.gmra.mrb[0].mxu0 %v587
        %v805 = vpop.f32.mrb[0].mxu0
        %v806 = vadd.f32 %v554, %v805
        %v807 = vpop.f32.mrb[0].mxu0
        %808 = vmatprep.mubr.f32.mxu0 0.0
        %809 = vmatmul.mubr.f32.gmra.mrb[0].mxu0 %v590
        %v810 = vpop.f32.mrb[0].mxu0
        %v811 = vadd.f32 %v559, %v810
        %v812 = vpop.f32.mrb[0].mxu0
        %813 = vmatprep.mubr.f32.mxu0 0.0
        %814 = vmatmul.mubr.f32.gmra.mrb[0].mxu0 %v593
        %v815 = vpop.f32.mrb[0].mxu0
        %v816 = vadd.f32 %v564, %v815
        %v817 = vpop.f32.mrb[0].mxu0
        %818 = vmatprep.mubr.f32.mxu0 0.0
        %819 = vmatmul.mubr.f32.gmra.mrb[0].mxu0 %v596
        %v820 = vpop.f32.mrb[0].mxu0
        %v821 = vadd.f32 %v569, %v820
        %v822 = vpop.f32.mrb[0].mxu0
        %823 = vmatprep.mubr.f32.mxu0 0.0
        %824 = vmatmul.mubr.f32.gmra.mrb[0].mxu0 %v599
        %v825 = vpop.f32.mrb[0].mxu0
        %v826 = vadd.f32 %v574, %v825
        %v827 = vpop.f32.mrb[0].mxu0
        %828 = vdwg.mxu0
        %v829 = vmax.f32 %v678, 0.0
        %v830 = vmax.f32 %v680, 0.0
        %v831 = vmax.f32 %v791, 0.0
        %v832 = vmax.f32 %v684, 0.0
        %v833 = vmax.f32 %v686, 0.0
        %v834 = vmax.f32 %v796, 0.0
        %v835 = vmax.f32 %v690, 0.0
        %v836 = vmax.f32 %v692, 0.0
        %v837 = vmax.f32 %v801, 0.0
        %v838 = vmax.f32 %v696, 0.0
        %v839 = vmax.f32 %v698, 0.0
        %v840 = vmax.f32 %v806, 0.0
        %v841 = vmax.f32 %v702, 0.0
        %v842 = vmax.f32 %v704, 0.0
        %v843 = vmax.f32 %v811, 0.0
        %v844 = vmax.f32 %v708, 0.0
        %v845 = vmax.f32 %v710, 0.0
        %v846 = vmax.f32 %v816, 0.0
        %v847 = vmax.f32 %v714, 0.0
        %v848 = vmax.f32 %v716, 0.0
        %v849 = vmax.f32 %v821, 0.0
        %v850 = vmax.f32 %v720, 0.0
        %v851 = vmax.f32 %v722, 0.0
        %v852 = vmax.f32 %v826, 0.0
        %v853 = vld [vmem:[%s5] sm:$0x7]
        %v855 = vlaneseq
        %v856 = vshrl.u32 %v855, 7
        %v857 = vsub.s32 0, %v856
        %v858 = vrot.slane %v853, %v857
        %v859 = vlaneseq
        %v860 = vshrl.u32 %v859, 7
        %v861 = vsub.s32 1, %v860
        %v862 = vrot.slane %v853, %v861
        %v863 = vlaneseq
        %v864 = vshrl.u32 %v863, 7
        %v865 = vsub.s32 2, %v864
        %v866 = vrot.slane %v853, %v865
        %v870 = vmul.f32 %v829, %v858
        %v871 = vmul.f32 %v830, %v862
        %v872 = vmul.f32 %v831, %v866
        %v873 = vmul.f32 %v832, %v858
        %v874 = vmul.f32 %v833, %v862
        %v875 = vmul.f32 %v834, %v866
        %v876 = vmul.f32 %v835, %v858
        %v877 = vmul.f32 %v836, %v862
        %v878 = vmul.f32 %v837, %v866
        %v879 = vmul.f32 %v838, %v858
        %v880 = vmul.f32 %v839, %v862
        %v881 = vmul.f32 %v840, %v866
        %v882 = vmul.f32 %v841, %v858
        %v883 = vmul.f32 %v842, %v862
        %v884 = vmul.f32 %v843, %v866
        %v885 = vmul.f32 %v844, %v858
        %v886 = vmul.f32 %v845, %v862
        %v887 = vmul.f32 %v846, %v866
        %v888 = vmul.f32 %v847, %v858
        %v889 = vmul.f32 %v848, %v862
        %v890 = vmul.f32 %v849, %v866
        %v891 = vmul.f32 %v850, %v858
        %v892 = vmul.f32 %v851, %v862
        %v893 = vmul.f32 %v852, %v866
        %v894 = vld [vmem:[%s3] sm:$0xff]
        %v895 = vld [vmem:[%s3 + $0x8] sm:$0x1]
        %vm896 = vcmask 523264
        %v898 = vsel %vm896, %v894, 0
        %v901 = vsel %vm896, %v895, 0
        %903 = vmatprep.subr.mxu0 %v871
        %904 = vmatpush1.msra.mxu0 %v870
        %905 = vmatprep.subr.mxu0 %v874
        %906 = vmatpush1.msra.mxu0 %v873
        %907 = vmatprep.subr.mxu0 %v877
        %908 = vmatpush1.msra.mxu0 %v876
        %909 = vmatprep.subr.mxu0 %v880
        %910 = vmatpush1.msra.mxu0 %v879
        %911 = vmatprep.subr.mxu0 %v883
        %912 = vmatpush1.msra.mxu0 %v882
        %913 = vmatprep.subr.mxu0 %v886
        %914 = vmatpush1.msra.mxu0 %v885
        %915 = vmatprep.subr.mxu0 %v889
        %916 = vmatpush1.msra.mxu0 %v888
        %917 = vmatprep.subr.mxu0 %v892
        %918 = vmatpush1.msra.mxu0 %v891
        %919 = vmatprep.subr.mxu0 0.0
        %920 = vmatpush1.msra.mxu0 0.0
        %921 = vmatprep.subr.mxu0 0.0
        %922 = vmatpush1.msra.mxu0 0.0
        %923 = vmatprep.subr.mxu0 0.0
        %924 = vmatpush1.msra.mxu0 0.0
        %925 = vmatprep.subr.mxu0 0.0
        %926 = vmatpush1.msra.mxu0 0.0
        %927 = vmatprep.subr.mxu0 0.0
        %928 = vmatpush1.msra.mxu0 0.0
        %929 = vmatprep.subr.mxu0 0.0
        %930 = vmatpush1.msra.mxu0 0.0
        %931 = vmatprep.subr.mxu0 0.0
        %932 = vmatpush1.msra.mxu0 0.0
        %933 = vmatprep.subr.mxu0 0.0
        %934 = vmatpush1.msra.mxu0 0.0
        %935 = vmatprep.subr.mxu0 0.0
        %936 = vmatpush1.msra.mxu0 0.0
        %937 = vmatprep.subr.mxu0 0.0
        %938 = vmatpush1.msra.mxu0 0.0
        %939 = vmatprep.subr.mxu0 0.0
        %940 = vmatpush1.msra.mxu0 0.0
        %941 = vmatprep.subr.mxu0 0.0
        %942 = vmatpush1.msra.mxu0 0.0
        %943 = vmatprep.subr.mxu0 0.0
        %944 = vmatpush1.msra.mxu0 0.0
        %945 = vmatprep.subr.mxu0 0.0
        %946 = vmatpush1.msra.mxu0 0.0
        %947 = vmatprep.subr.mxu0 0.0
        %948 = vmatpush1.msra.mxu0 0.0
        %949 = vmatprep.subr.mxu0 0.0
        %950 = vmatpush1.msra.mxu0 0.0
        %951 = vmatprep.subr.mxu0 0.0
        %952 = vmatpush1.msra.mxu0 0.0
        %953 = vmatprep.subr.mxu0 0.0
        %954 = vmatpush1.msra.mxu0 0.0
        %955 = vmatprep.subr.mxu0 0.0
        %956 = vmatpush1.msra.mxu0 0.0
        %957 = vmatprep.subr.mxu0 0.0
        %958 = vmatpush1.msra.mxu0 0.0
        %959 = vmatprep.subr.mxu0 0.0
        %960 = vmatpush1.msra.mxu0 0.0
        %961 = vmatprep.subr.mxu0 0.0
        %962 = vmatpush1.msra.mxu0 0.0
        %963 = vmatprep.subr.mxu0 0.0
        %964 = vmatpush1.msra.mxu0 0.0
        %965 = vmatprep.subr.mxu0 0.0
        %966 = vmatpush1.msra.mxu0 0.0
        %967 = vmatprep.mubr.f32.mxu0 0.0
        %968 = vmatmul.mubr.f32.gmra.mrb[0].mxu0 %v898
        %v969 = vpop.f32.mrb[0].mxu0
        %v970 = vadd.f32 0.0, %v969
        %v971 = vpop.f32.mrb[0].mxu0
        %v972 = vadd.f32 0.0, %v971
        %973 = vmatprep.mubr.f32.mxu0 0.0
        %974 = vmatmul.mubr.f32.gmra.mrb[0].mxu0 %v901
        %v975 = vpop.f32.mrb[0].mxu0
        %v976 = vadd.f32 0.0, %v975
        %v977 = vpop.f32.mrb[0].mxu0
        %v978 = vadd.f32 0.0, %v977
        %979 = vdwg.mxu0
        %980 = vmatprep.subr.mxu0 0.0
        %981 = vmatpush1.msra.mxu0 %v872
        %982 = vmatprep.subr.mxu0 0.0
        %983 = vmatpush1.msra.mxu0 %v875
        %984 = vmatprep.subr.mxu0 0.0
        %985 = vmatpush1.msra.mxu0 %v878
        %986 = vmatprep.subr.mxu0 0.0
        %987 = vmatpush1.msra.mxu0 %v881
        %988 = vmatprep.subr.mxu0 0.0
        %989 = vmatpush1.msra.mxu0 %v884
        %990 = vmatprep.subr.mxu0 0.0
        %991 = vmatpush1.msra.mxu0 %v887
        %992 = vmatprep.subr.mxu0 0.0
        %993 = vmatpush1.msra.mxu0 %v890
        %994 = vmatprep.subr.mxu0 0.0
        %995 = vmatpush1.msra.mxu0 %v893
        %996 = vmatprep.subr.mxu0 0.0
        %997 = vmatpush1.msra.mxu0 0.0
        %998 = vmatprep.subr.mxu0 0.0
        %999 = vmatpush1.msra.mxu0 0.0
        %1000 = vmatprep.subr.mxu0 0.0
        %1001 = vmatpush1.msra.mxu0 0.0
        %1002 = vmatprep.subr.mxu0 0.0
        %1003 = vmatpush1.msra.mxu0 0.0
        %1004 = vmatprep.subr.mxu0 0.0
        %1005 = vmatpush1.msra.mxu0 0.0
        %1006 = vmatprep.subr.mxu0 0.0
        %1007 = vmatpush1.msra.mxu0 0.0
        %1008 = vmatprep.subr.mxu0 0.0
        %1009 = vmatpush1.msra.mxu0 0.0
        %1010 = vmatprep.subr.mxu0 0.0
        %1011 = vmatpush1.msra.mxu0 0.0
        %1012 = vmatprep.subr.mxu0 0.0
        %1013 = vmatpush1.msra.mxu0 0.0
        %1014 = vmatprep.subr.mxu0 0.0
        %1015 = vmatpush1.msra.mxu0 0.0
        %1016 = vmatprep.subr.mxu0 0.0
        %1017 = vmatpush1.msra.mxu0 0.0
        %1018 = vmatprep.subr.mxu0 0.0
        %1019 = vmatpush1.msra.mxu0 0.0
        %1020 = vmatprep.subr.mxu0 0.0
        %1021 = vmatpush1.msra.mxu0 0.0
        %1022 = vmatprep.subr.mxu0 0.0
        %1023 = vmatpush1.msra.mxu0 0.0
        %1024 = vmatprep.subr.mxu0 0.0
        %1025 = vmatpush1.msra.mxu0 0.0
        %1026 = vmatprep.subr.mxu0 0.0
        %1027 = vmatpush1.msra.mxu0 0.0
        %1028 = vmatprep.subr.mxu0 0.0
        %1029 = vmatpush1.msra.mxu0 0.0
        %1030 = vmatprep.subr.mxu0 0.0
        %1031 = vmatpush1.msra.mxu0 0.0
        %1032 = vmatprep.subr.mxu0 0.0
        %1033 = vmatpush1.msra.mxu0 0.0
        %1034 = vmatprep.subr.mxu0 0.0
        %1035 = vmatpush1.msra.mxu0 0.0
        %1036 = vmatprep.subr.mxu0 0.0
        %1037 = vmatpush1.msra.mxu0 0.0
        %1038 = vmatprep.subr.mxu0 0.0
        %1039 = vmatpush1.msra.mxu0 0.0
        %1040 = vmatprep.subr.mxu0 0.0
        %1041 = vmatpush1.msra.mxu0 0.0
        %1042 = vmatprep.subr.mxu0 0.0
        %1043 = vmatpush1.msra.mxu0 0.0
        %1044 = vmatprep.mubr.f32.mxu0 0.0
        %1045 = vmatmul.mubr.f32.gmra.mrb[0].mxu0 %v898
        %v1046 = vpop.f32.mrb[0].mxu0
        %v1047 = vadd.f32 0.0, %v1046
        %v1048 = vpop.f32.mrb[0].mxu0
        %1049 = vmatprep.mubr.f32.mxu0 0.0
        %1050 = vmatmul.mubr.f32.gmra.mrb[0].mxu0 %v901
        %v1051 = vpop.f32.mrb[0].mxu0
        %v1052 = vadd.f32 0.0, %v1051
        %v1053 = vpop.f32.mrb[0].mxu0
        %1054 = vdwg.mxu0
        %vm1055 = vcmask 154624
        %1056 = vst.msk [vmem:[#allocation3] sm:$0xff] %vm1055, 0.0
        %vm1057 = vcmask 147456
        %1058 = vst.msk [vmem:[#allocation3 + $0x18] sm:$0x1] %vm1057, 0.0
        %vm1059 = vcmask 556424
        %1060 = vst.msk [vmem:[#allocation3 + $0x10] sm:$0xff] %vm1059, 0.0
        %vm1061 = vcmask 549256
        %1062 = vst.msk [vmem:[#allocation3 + $0x28] sm:$0x1] %vm1061, 0.0
        %1069 = vrot.lane.b32.xlu0 %v970, 19
        %v1070 = vpop.permute.xlu0 %1069
        %1071 = vrot.lane.b32.xlu0 %v972, 19
        %v1072 = vpop.permute.xlu0 %1071
        %1073 = vrot.lane.b32.xlu0 %v1047, 19
        %v1074 = vpop.permute.xlu0 %1073
        %1075 = vrot.lane.b32.xlu0 %v976, 19
        %v1076 = vpop.permute.xlu0 %1075
        %1077 = vrot.lane.b32.xlu0 %v978, 19
        %v1078 = vpop.permute.xlu0 %1077
        %1079 = vrot.lane.b32.xlu0 %v1052, 19
        %v1080 = vpop.permute.xlu0 %1079
        %v1081 = vsel %vm1055, %v1070, %v1072
        %v1082 = vsel %vm1055, %v1072, %v1074
        %v1083 = vsel %vm1055, %v1076, %v1078
        %v1084 = vsel %vm1055, %v1078, %v1080
        %vm1091 = vcmask 1047704
        %1092 = vst.msk [vmem:[#allocation3] sm:$0xff] %vm1091, %v1070
        %1093 = vst [vmem:[#allocation3 + $0x8] sm:$0xff] %v1081
        %vm1094 = vcmask 400384
        %1095 = vst.msk [vmem:[#allocation3 + $0x10] sm:$0xff] %vm1094, %v1082
        %vm1096 = vcmask 1040536
        %1097 = vst.msk [vmem:[#allocation3 + $0x18] sm:$0x1] %vm1096, %v1076
        %1098 = vst [vmem:[#allocation3 + $0x20] sm:$0x1] %v1083
        %vm1099 = vcmask 393216
        %1100 = vst.msk [vmem:[#allocation3 + $0x28] sm:$0x1] %vm1099, %v1084
        %s1101 = sld [smem:[#allocation5]]
        %v1102 = vstv %s1101
        %v1103 = vadd.f32 %v1102, 0.0
        %v1104 = vld [vmem:[#allocation3] ss:$8 sm:$0x7]
        %v1105 = vadd.f32 %v1103, %v1104
        %s1106 = scalar_lea.vmem [#allocation3], 1
        %v1107 = vld [vmem:[%s1106] ss:$8 sm:$0x7]
        %1109 = vrot.lane.b32.xlu0 %v1107, 127
        %v1110 = vpop.permute.xlu0 %1109
        %v1111 = vrot.slane %v1110, 1
        %v1112 = vsel %vm328, %v1110, %v1111
        %v1114 = vadd.f32 %v1105, %v1112
        %s1115 = scalar_lea.vmem [#allocation3], 2
        %v1116 = vld [vmem:[%s1115] ss:$8 sm:$0x7]
        %1118 = vrot.lane.b32.xlu0 %v1116, 126
        %v1119 = vpop.permute.xlu0 %1118
        %v1120 = vrot.slane %v1119, 1
        %v1121 = vsel %vm352, %v1119, %v1120
        %v1123 = vadd.f32 %v1114, %v1121
        %s1124 = scalar_lea.vmem [#allocation3], 3
        %v1125 = vld [vmem:[%s1124] ss:$8 sm:$0x7]
        %1127 = vrot.lane.b32.xlu0 %v1125, 110
        %v1128 = vpop.permute.xlu0 %1127
        %v1129 = vrot.slane %v1128, 1
        %v1130 = vsel %vm380, %v1128, %v1129
        %v1132 = vadd.f32 %v1123, %v1130
        %s1133 = scalar_lea.vmem [#allocation3], 4
        %v1134 = vld [vmem:[%s1133] ss:$8 sm:$0x7]
        %1136 = vrot.lane.b32.xlu0 %v1134, 109
        %v1137 = vpop.permute.xlu0 %1136
        %v1138 = vrot.slane %v1137, 1
        %v1139 = vsel %vm402, %v1137, %v1138
        %v1141 = vadd.f32 %v1132, %v1139
        %s1142 = scalar_lea.vmem [#allocation3], 5
        %v1143 = vld [vmem:[%s1142] ss:$8 sm:$0x7]
        %1145 = vrot.lane.b32.xlu0 %v1143, 108
        %v1146 = vpop.permute.xlu0 %1145
        %v1147 = vrot.slane %v1146, 1
        %v1148 = vsel %vm426, %v1146, %v1147
        %v1150 = vadd.f32 %v1141, %v1148
        %s1151 = scalar_lea.vmem [#allocation3], 6
        %v1152 = vld [vmem:[%s1151] ss:$8 sm:$0x7]
        %1154 = vrot.lane.b32.xlu0 %v1152, 92
        %v1155 = vpop.permute.xlu0 %1154
        %v1156 = vrot.slane %v1155, 1
        %v1157 = vsel %vm454, %v1155, %v1156
        %v1159 = vadd.f32 %v1150, %v1157
        %s1160 = scalar_lea.vmem [#allocation3], 7
        %v1161 = vld [vmem:[%s1160] ss:$8 sm:$0x7]
        %1163 = vrot.lane.b32.xlu0 %v1161, 91
        %v1164 = vpop.permute.xlu0 %1163
        %v1165 = vrot.slane %v1164, 1
        %v1166 = vsel %vm478, %v1164, %v1165
        %v1168 = vadd.f32 %v1159, %v1166
        %s1169 = scalar_lea.vmem [#allocation3], 24
        %v1170 = vld [vmem:[%s1169] ss:$8 sm:$0x7]
        %1172 = vrot.lane.b32.xlu0 %v1170, 90
        %v1173 = vpop.permute.xlu0 %1172
        %v1174 = vrot.slane %v1173, 1
        %v1175 = vsel %vm499, %v1173, %v1174
        %v1177 = vadd.f32 %v1168, %v1175
        %vm1178 = vcmask 122880
        %1179 = vst.msk [vmem:[#allocation4] sm:$0x1] %vm1178, %v1177
        %v1181 = vlaneseq
        %v1182 = vshrl.u32 %v1181, 7
        %v1183 = vsub.s32 0, %v1182
        %v1184 = vrot.slane %v1177, %v1183
        %1185 = vrot.lane.b32.xlu0 %v1184, 110
        %v1186 = vpop.permute.xlu0 %1185
        %1188 = vst.msk [vmem:[#allocation4 + $0x1] sm:$0x1] %vm1178, %v1186
        %1189 = vrot.lane.b32.xlu0 %v1184, 92
        %v1190 = vpop.permute.xlu0 %1189
        %1192 = vst.msk [vmem:[#allocation4 + $0x2] sm:$0x1] %vm1178, %v1190
        %1193 = vrot.lane.b32.xlu0 %v1184, 74
        %v1194 = vpop.permute.xlu0 %1193
        %1196 = vst.msk [vmem:[#allocation4 + $0x3] sm:$0x1] %vm1178, %v1194
        %1197 = vrot.lane.b32.xlu0 %v1184, 56
        %v1198 = vpop.permute.xlu0 %1197
        %1200 = vst.msk [vmem:[#allocation4 + $0x4] sm:$0x1] %vm1178, %v1198
        %1201 = vrot.lane.b32.xlu0 %v1184, 38
        %v1202 = vpop.permute.xlu0 %1201
        %1204 = vst.msk [vmem:[#allocation4 + $0x5] sm:$0x1] %vm1178, %v1202
        %1205 = vrot.lane.b32.xlu0 %v1184, 20
        %v1206 = vpop.permute.xlu0 %1205
        %1208 = vst.msk [vmem:[#allocation4 + $0x6] sm:$0x1] %vm1178, %v1206
        %v1209 = vlaneseq
        %v1210 = vshrl.u32 %v1209, 7
        %v1211 = vsub.s32 1, %v1210
        %v1212 = vrot.slane %v1177, %v1211
        %1213 = vrot.lane.b32.xlu0 %v1184, 2
        %v1214 = vpop.permute.xlu0 %1213
        %1215 = vrot.lane.b32.xlu0 %v1212, 2
        %v1216 = vpop.permute.xlu0 %1215
        %vm1217 = vcmask 15360
        %v1218 = vsel %vm1217, %v1214, %v1216
        %1220 = vst.msk [vmem:[#allocation4 + $0x7] sm:$0x1] %vm1178, %v1218
        %1221 = vrot.lane.b32.xlu0 %v1212, 112
        %v1222 = vpop.permute.xlu0 %1221
        %1224 = vst.msk [vmem:[#allocation4 + $0x8] sm:$0x1] %vm1178, %v1222
        %1225 = vrot.lane.b32.xlu0 %v1212, 94
        %v1226 = vpop.permute.xlu0 %1225
        %1228 = vst.msk [vmem:[#allocation4 + $0x9] sm:$0x1] %vm1178, %v1226
        %1229 = vrot.lane.b32.xlu0 %v1212, 76
        %v1230 = vpop.permute.xlu0 %1229
        %1232 = vst.msk [vmem:[#allocation4 + $0xa] sm:$0x1] %vm1178, %v1230
        %1233 = vrot.lane.b32.xlu0 %v1212, 58
        %v1234 = vpop.permute.xlu0 %1233
        %1236 = vst.msk [vmem:[#allocation4 + $0xb] sm:$0x1] %vm1178, %v1234
        %1237 = vrot.lane.b32.xlu0 %v1212, 40
        %v1238 = vpop.permute.xlu0 %1237
        %1240 = vst.msk [vmem:[#allocation4 + $0xc] sm:$0x1] %vm1178, %v1238
        %1241 = vrot.lane.b32.xlu0 %v1212, 22
        %v1242 = vpop.permute.xlu0 %1241
        %1244 = vst.msk [vmem:[#allocation4 + $0xd] sm:$0x1] %vm1178, %v1242
        %v1245 = vlaneseq
        %v1246 = vshrl.u32 %v1245, 7
        %v1247 = vsub.s32 2, %v1246
        %v1248 = vrot.slane %v1177, %v1247
        %1249 = vrot.lane.b32.xlu0 %v1212, 4
        %v1250 = vpop.permute.xlu0 %1249
        %1251 = vrot.lane.b32.xlu0 %v1248, 4
        %v1252 = vpop.permute.xlu0 %1251
        %vm1253 = vcmask 31744
        %v1254 = vsel %vm1253, %v1250, %v1252
        %1256 = vst.msk [vmem:[#allocation4 + $0xe] sm:$0x1] %vm1178, %v1254
        %1257 = vrot.lane.b32.xlu0 %v1248, 114
        %v1258 = vpop.permute.xlu0 %1257
        %1260 = vst.msk [vmem:[#allocation4 + $0xf] sm:$0x1] %vm1178, %v1258
        %v1261 = vld [vmem:[#allocation4] sm:$0xff]
        %v1262 = vld [vmem:[#allocation4 + $0x8] sm:$0xff]
        %v1263 = vld [vmem:[%s6] sm:$0xff]
        %v1264 = vld [vmem:[%s6 + $0x8] sm:$0xff]
        %v1265 = vld [vmem:[%s6 + $0x10] sm:$0xff]
        %v1266 = vld [vmem:[%s6 + $0x18] sm:$0xff]
        %v1267 = vld [vmem:[%s6 + $0x20] sm:$0xff]
        %v1268 = vld [vmem:[%s6 + $0x28] sm:$0xff]
        %v1269 = vld [vmem:[%s6 + $0x30] sm:$0xff]
        %v1270 = vld [vmem:[%s6 + $0x38] sm:$0xff]
        %v1271 = vld [vmem:[%s6 + $0x40] sm:$0xff]
        %v1272 = vld [vmem:[%s6 + $0x48] sm:$0xff]
        %v1273 = vld [vmem:[%s6 + $0x50] sm:$0xff]
        %v1274 = vld [vmem:[%s6 + $0x58] sm:$0xff]
        %v1275 = vld [vmem:[%s6 + $0x60] sm:$0xff]
        %v1276 = vld [vmem:[%s6 + $0x68] sm:$0xff]
        %v1277 = vld [vmem:[%s6 + $0x70] sm:$0xff]
        %v1278 = vld [vmem:[%s6 + $0x78] sm:$0xff]
        %v1279 = vld [vmem:[%s6 + $0x80] sm:$0xff]
        %v1280 = vld [vmem:[%s6 + $0x88] sm:$0xff]
        %vm1281 = vcmask 130048
        %v1283 = vsel %vm1281, %v1263, 0
        %v1286 = vsel %vm1281, %v1264, 0
        %v1289 = vsel %vm1281, %v1265, 0
        %v1292 = vsel %vm1281, %v1266, 0
        %v1295 = vsel %vm1281, %v1267, 0
        %v1298 = vsel %vm1281, %v1268, 0
        %v1301 = vsel %vm1281, %v1269, 0
        %v1304 = vsel %vm1281, %v1270, 0
        %v1307 = vsel %vm1281, %v1271, 0
        %v1310 = vsel %vm1281, %v1272, 0
        %v1313 = vsel %vm1281, %v1273, 0
        %v1316 = vsel %vm1281, %v1274, 0
        %v1319 = vsel %vm1281, %v1275, 0
        %v1322 = vsel %vm1281, %v1276, 0
        %v1325 = vsel %vm1281, %v1277, 0
        %v1328 = vsel %vm1281, %v1278, 0
        %v1331 = vsel %vm1281, %v1279, 0
        %v1334 = vsel %vm1281, %v1280, 0
        %1336 = vmatprep.subr.mxu0 0.0
        %1337 = vmatpush1.msra.mxu0 %v1261
        %1338 = vmatprep.subr.mxu0 0.0
        %1339 = vmatpush1.msra.mxu0 %v1262
        %1340 = vmatprep.subr.mxu0 0.0
        %1341 = vmatpush1.msra.mxu0 0.0
        %1342 = vmatprep.subr.mxu0 0.0
        %1343 = vmatpush1.msra.mxu0 0.0
        %1344 = vmatprep.subr.mxu0 0.0
        %1345 = vmatpush1.msra.mxu0 0.0
        %1346 = vmatprep.subr.mxu0 0.0
        %1347 = vmatpush1.msra.mxu0 0.0
        %1348 = vmatprep.subr.mxu0 0.0
        %1349 = vmatpush1.msra.mxu0 0.0
        %1350 = vmatprep.subr.mxu0 0.0
        %1351 = vmatpush1.msra.mxu0 0.0
        %1352 = vmatprep.subr.mxu0 0.0
        %1353 = vmatpush1.msra.mxu0 0.0
        %1354 = vmatprep.subr.mxu0 0.0
        %1355 = vmatpush1.msra.mxu0 0.0
        %1356 = vmatprep.subr.mxu0 0.0
        %1357 = vmatpush1.msra.mxu0 0.0
        %1358 = vmatprep.subr.mxu0 0.0
        %1359 = vmatpush1.msra.mxu0 0.0
        %1360 = vmatprep.subr.mxu0 0.0
        %1361 = vmatpush1.msra.mxu0 0.0
        %1362 = vmatprep.subr.mxu0 0.0
        %1363 = vmatpush1.msra.mxu0 0.0
        %1364 = vmatprep.subr.mxu0 0.0
        %1365 = vmatpush1.msra.mxu0 0.0
        %1366 = vmatprep.subr.mxu0 0.0
        %1367 = vmatpush1.msra.mxu0 0.0
        %1368 = vmatprep.subr.mxu0 0.0
        %1369 = vmatpush1.msra.mxu0 0.0
        %1370 = vmatprep.subr.mxu0 0.0
        %1371 = vmatpush1.msra.mxu0 0.0
        %1372 = vmatprep.subr.mxu0 0.0
        %1373 = vmatpush1.msra.mxu0 0.0
        %1374 = vmatprep.subr.mxu0 0.0
        %1375 = vmatpush1.msra.mxu0 0.0
        %1376 = vmatprep.subr.mxu0 0.0
        %1377 = vmatpush1.msra.mxu0 0.0
        %1378 = vmatprep.subr.mxu0 0.0
        %1379 = vmatpush1.msra.mxu0 0.0
        %1380 = vmatprep.subr.mxu0 0.0
        %1381 = vmatpush1.msra.mxu0 0.0
        %1382 = vmatprep.subr.mxu0 0.0
        %1383 = vmatpush1.msra.mxu0 0.0
        %1384 = vmatprep.subr.mxu0 0.0
        %1385 = vmatpush1.msra.mxu0 0.0
        %1386 = vmatprep.subr.mxu0 0.0
        %1387 = vmatpush1.msra.mxu0 0.0
        %1388 = vmatprep.subr.mxu0 0.0
        %1389 = vmatpush1.msra.mxu0 0.0
        %1390 = vmatprep.subr.mxu0 0.0
        %1391 = vmatpush1.msra.mxu0 0.0
        %1392 = vmatprep.subr.mxu0 0.0
        %1393 = vmatpush1.msra.mxu0 0.0
        %1394 = vmatprep.subr.mxu0 0.0
        %1395 = vmatpush1.msra.mxu0 0.0
        %1396 = vmatprep.subr.mxu0 0.0
        %1397 = vmatpush1.msra.mxu0 0.0
        %1398 = vmatprep.subr.mxu0 0.0
        %1399 = vmatpush1.msra.mxu0 0.0
        %1400 = vmatprep.mubr.f32.mxu0 0.0
        %1401 = vmatmul.mubr.f32.gmra.mrb[0].mxu0 %v1283
        %v1402 = vpop.f32.mrb[0].mxu0
        %v1403 = vadd.f32 0.0, %v1402
        %v1404 = vpop.f32.mrb[0].mxu0
        %1405 = vmatprep.mubr.f32.mxu0 0.0
        %1406 = vmatmul.mubr.f32.gmra.mrb[0].mxu0 %v1286
        %v1407 = vpop.f32.mrb[0].mxu0
        %v1408 = vadd.f32 0.0, %v1407
        %v1409 = vpop.f32.mrb[0].mxu0
        %1410 = vmatprep.mubr.f32.mxu0 0.0
        %1411 = vmatmul.mubr.f32.gmra.mrb[0].mxu0 %v1289
        %v1412 = vpop.f32.mrb[0].mxu0
        %v1413 = vadd.f32 0.0, %v1412
        %v1414 = vpop.f32.mrb[0].mxu0
        %1415 = vmatprep.mubr.f32.mxu0 0.0
        %1416 = vmatmul.mubr.f32.gmra.mrb[0].mxu0 %v1292
        %v1417 = vpop.f32.mrb[0].mxu0
        %v1418 = vadd.f32 0.0, %v1417
        %v1419 = vpop.f32.mrb[0].mxu0
        %1420 = vmatprep.mubr.f32.mxu0 0.0
        %1421 = vmatmul.mubr.f32.gmra.mrb[0].mxu0 %v1295
        %v1422 = vpop.f32.mrb[0].mxu0
        %v1423 = vadd.f32 0.0, %v1422
        %v1424 = vpop.f32.mrb[0].mxu0
        %1425 = vmatprep.mubr.f32.mxu0 0.0
        %1426 = vmatmul.mubr.f32.gmra.mrb[0].mxu0 %v1298
        %v1427 = vpop.f32.mrb[0].mxu0
        %v1428 = vadd.f32 0.0, %v1427
        %v1429 = vpop.f32.mrb[0].mxu0
        %1430 = vmatprep.mubr.f32.mxu0 0.0
        %1431 = vmatmul.mubr.f32.gmra.mrb[0].mxu0 %v1301
        %v1432 = vpop.f32.mrb[0].mxu0
        %v1433 = vadd.f32 0.0, %v1432
        %v1434 = vpop.f32.mrb[0].mxu0
        %1435 = vmatprep.mubr.f32.mxu0 0.0
        %1436 = vmatmul.mubr.f32.gmra.mrb[0].mxu0 %v1304
        %v1437 = vpop.f32.mrb[0].mxu0
        %v1438 = vadd.f32 0.0, %v1437
        %v1439 = vpop.f32.mrb[0].mxu0
        %1440 = vmatprep.mubr.f32.mxu0 0.0
        %1441 = vmatmul.mubr.f32.gmra.mrb[0].mxu0 %v1307
        %v1442 = vpop.f32.mrb[0].mxu0
        %v1443 = vadd.f32 0.0, %v1442
        %v1444 = vpop.f32.mrb[0].mxu0
        %1445 = vmatprep.mubr.f32.mxu0 0.0
        %1446 = vmatmul.mubr.f32.gmra.mrb[0].mxu0 %v1310
        %v1447 = vpop.f32.mrb[0].mxu0
        %v1448 = vadd.f32 0.0, %v1447
        %v1449 = vpop.f32.mrb[0].mxu0
        %1450 = vmatprep.mubr.f32.mxu0 0.0
        %1451 = vmatmul.mubr.f32.gmra.mrb[0].mxu0 %v1313
        %v1452 = vpop.f32.mrb[0].mxu0
        %v1453 = vadd.f32 0.0, %v1452
        %v1454 = vpop.f32.mrb[0].mxu0
        %1455 = vmatprep.mubr.f32.mxu0 0.0
        %1456 = vmatmul.mubr.f32.gmra.mrb[0].mxu0 %v1316
        %v1457 = vpop.f32.mrb[0].mxu0
        %v1458 = vadd.f32 0.0, %v1457
        %v1459 = vpop.f32.mrb[0].mxu0
        %1460 = vmatprep.mubr.f32.mxu0 0.0
        %1461 = vmatmul.mubr.f32.gmra.mrb[0].mxu0 %v1319
        %v1462 = vpop.f32.mrb[0].mxu0
        %v1463 = vadd.f32 0.0, %v1462
        %v1464 = vpop.f32.mrb[0].mxu0
        %1465 = vmatprep.mubr.f32.mxu0 0.0
        %1466 = vmatmul.mubr.f32.gmra.mrb[0].mxu0 %v1322
        %v1467 = vpop.f32.mrb[0].mxu0
        %v1468 = vadd.f32 0.0, %v1467
        %v1469 = vpop.f32.mrb[0].mxu0
        %1470 = vmatprep.mubr.f32.mxu0 0.0
        %1471 = vmatmul.mubr.f32.gmra.mrb[0].mxu0 %v1325
        %v1472 = vpop.f32.mrb[0].mxu0
        %v1473 = vadd.f32 0.0, %v1472
        %v1474 = vpop.f32.mrb[0].mxu0
        %1475 = vmatprep.mubr.f32.mxu0 0.0
        %1476 = vmatmul.mubr.f32.gmra.mrb[0].mxu0 %v1328
        %v1477 = vpop.f32.mrb[0].mxu0
        %v1478 = vadd.f32 0.0, %v1477
        %v1479 = vpop.f32.mrb[0].mxu0
        %1480 = vmatprep.mubr.f32.mxu0 0.0
        %1481 = vmatmul.mubr.f32.gmra.mrb[0].mxu0 %v1331
        %v1482 = vpop.f32.mrb[0].mxu0
        %v1483 = vadd.f32 0.0, %v1482
        %v1484 = vpop.f32.mrb[0].mxu0
        %1485 = vmatprep.mubr.f32.mxu0 0.0
        %1486 = vmatmul.mubr.f32.gmra.mrb[0].mxu0 %v1334
        %v1487 = vpop.f32.mrb[0].mxu0
        %v1488 = vadd.f32 0.0, %v1487
        %v1489 = vpop.f32.mrb[0].mxu0
        %1490 = vdwg.mxu0
        %v1491 = vld [vmem:[%s7] sm:$0xff]
        %v1492 = vld [vmem:[%s7 + $0x8] sm:$0xff]
        %v1493 = vld [vmem:[%s7 + $0x10] sm:$0xff]
        %v1494 = vld [vmem:[%s7 + $0x18] sm:$0xff]
        %v1496 = vsel %vm1281, %v1403, 0
        %v1499 = vsel %vm1281, %v1408, 0
        %v1502 = vsel %vm1281, %v1413, 0
        %v1505 = vsel %vm1281, %v1418, 0
        %v1508 = vsel %vm1281, %v1423, 0
        %v1511 = vsel %vm1281, %v1428, 0
        %v1514 = vsel %vm1281, %v1433, 0
        %v1517 = vsel %vm1281, %v1438, 0
        %v1520 = vsel %vm1281, %v1443, 0
        %v1523 = vsel %vm1281, %v1448, 0
        %v1526 = vsel %vm1281, %v1453, 0
        %v1529 = vsel %vm1281, %v1458, 0
        %v1532 = vsel %vm1281, %v1463, 0
        %v1535 = vsel %vm1281, %v1468, 0
        %v1538 = vsel %vm1281, %v1473, 0
        %v1541 = vsel %vm1281, %v1478, 0
        %v1544 = vsel %vm1281, %v1483, 0
        %v1547 = vsel %vm1281, %v1488, 0
        %1549 = vmatprep.subr.mxu0 %v1492
        %1550 = vmatpush1.msra.mxu0 %v1491
        %1551 = vmatprep.subr.mxu0 %v1494
        %1552 = vmatpush1.msra.mxu0 %v1493
        %1553 = vmatprep.subr.mxu0 0.0
        %1554 = vmatpush1.msra.mxu0 0.0
        %1555 = vmatprep.subr.mxu0 0.0
        %1556 = vmatpush1.msra.mxu0 0.0
        %1557 = vmatprep.subr.mxu0 0.0
        %1558 = vmatpush1.msra.mxu0 0.0
        %1559 = vmatprep.subr.mxu0 0.0
        %1560 = vmatpush1.msra.mxu0 0.0
        %1561 = vmatprep.subr.mxu0 0.0
        %1562 = vmatpush1.msra.mxu0 0.0
        %1563 = vmatprep.subr.mxu0 0.0
        %1564 = vmatpush1.msra.mxu0 0.0
        %1565 = vmatprep.subr.mxu0 0.0
        %1566 = vmatpush1.msra.mxu0 0.0
        %1567 = vmatprep.subr.mxu0 0.0
        %1568 = vmatpush1.msra.mxu0 0.0
        %1569 = vmatprep.subr.mxu0 0.0
        %1570 = vmatpush1.msra.mxu0 0.0
        %1571 = vmatprep.subr.mxu0 0.0
        %1572 = vmatpush1.msra.mxu0 0.0
        %1573 = vmatprep.subr.mxu0 0.0
        %1574 = vmatpush1.msra.mxu0 0.0
        %1575 = vmatprep.subr.mxu0 0.0
        %1576 = vmatpush1.msra.mxu0 0.0
        %1577 = vmatprep.subr.mxu0 0.0
        %1578 = vmatpush1.msra.mxu0 0.0
        %1579 = vmatprep.subr.mxu0 0.0
        %1580 = vmatpush1.msra.mxu0 0.0
        %1581 = vmatprep.subr.mxu0 0.0
        %1582 = vmatpush1.msra.mxu0 0.0
        %1583 = vmatprep.subr.mxu0 0.0
        %1584 = vmatpush1.msra.mxu0 0.0
        %1585 = vmatprep.subr.mxu0 0.0
        %1586 = vmatpush1.msra.mxu0 0.0
        %1587 = vmatprep.subr.mxu0 0.0
        %1588 = vmatpush1.msra.mxu0 0.0
        %1589 = vmatprep.subr.mxu0 0.0
        %1590 = vmatpush1.msra.mxu0 0.0
        %1591 = vmatprep.subr.mxu0 0.0
        %1592 = vmatpush1.msra.mxu0 0.0
        %1593 = vmatprep.subr.mxu0 0.0
        %1594 = vmatpush1.msra.mxu0 0.0
        %1595 = vmatprep.subr.mxu0 0.0
        %1596 = vmatpush1.msra.mxu0 0.0
        %1597 = vmatprep.subr.mxu0 0.0
        %1598 = vmatpush1.msra.mxu0 0.0
        %1599 = vmatprep.subr.mxu0 0.0
        %1600 = vmatpush1.msra.mxu0 0.0
        %1601 = vmatprep.subr.mxu0 0.0
        %1602 = vmatpush1.msra.mxu0 0.0
        %1603 = vmatprep.subr.mxu0 0.0
        %1604 = vmatpush1.msra.mxu0 0.0
        %1605 = vmatprep.subr.mxu0 0.0
        %1606 = vmatpush1.msra.mxu0 0.0
        %1607 = vmatprep.subr.mxu0 0.0
        %1608 = vmatpush1.msra.mxu0 0.0
        %1609 = vmatprep.subr.mxu0 0.0
        %1610 = vmatpush1.msra.mxu0 0.0
        %1611 = vmatprep.subr.mxu0 0.0
        %1612 = vmatpush1.msra.mxu0 0.0
        %1613 = vmatprep.mubr.f32.mxu0 0.0
        %1614 = vmatmul.mubr.f32.gmra.mrb[0].mxu0 %v1496
        %v1615 = vpop.f32.mrb[0].mxu0
        %v1616 = vadd.f32 0.0, %v1615
        %v1617 = vpop.f32.mrb[0].mxu0
        %v1618 = vadd.f32 0.0, %v1617
        %1619 = vmatprep.mubr.f32.mxu0 0.0
        %1620 = vmatmul.mubr.f32.gmra.mrb[0].mxu0 %v1499
        %v1621 = vpop.f32.mrb[0].mxu0
        %v1622 = vadd.f32 0.0, %v1621
        %v1623 = vpop.f32.mrb[0].mxu0
        %v1624 = vadd.f32 0.0, %v1623
        %1625 = vmatprep.mubr.f32.mxu0 0.0
        %1626 = vmatmul.mubr.f32.gmra.mrb[0].mxu0 %v1502
        %v1627 = vpop.f32.mrb[0].mxu0
        %v1628 = vadd.f32 0.0, %v1627
        %v1629 = vpop.f32.mrb[0].mxu0
        %v1630 = vadd.f32 0.0, %v1629
        %1631 = vmatprep.mubr.f32.mxu0 0.0
        %1632 = vmatmul.mubr.f32.gmra.mrb[0].mxu0 %v1505
        %v1633 = vpop.f32.mrb[0].mxu0
        %v1634 = vadd.f32 0.0, %v1633
        %v1635 = vpop.f32.mrb[0].mxu0
        %v1636 = vadd.f32 0.0, %v1635
        %1637 = vmatprep.mubr.f32.mxu0 0.0
        %1638 = vmatmul.mubr.f32.gmra.mrb[0].mxu0 %v1508
        %v1639 = vpop.f32.mrb[0].mxu0
        %v1640 = vadd.f32 0.0, %v1639
        %v1641 = vpop.f32.mrb[0].mxu0
        %v1642 = vadd.f32 0.0, %v1641
        %1643 = vmatprep.mubr.f32.mxu0 0.0
        %1644 = vmatmul.mubr.f32.gmra.mrb[0].mxu0 %v1511
        %v1645 = vpop.f32.mrb[0].mxu0
        %v1646 = vadd.f32 0.0, %v1645
        %v1647 = vpop.f32.mrb[0].mxu0
        %v1648 = vadd.f32 0.0, %v1647
        %1649 = vmatprep.mubr.f32.mxu0 0.0
        %1650 = vmatmul.mubr.f32.gmra.mrb[0].mxu0 %v1514
        %v1651 = vpop.f32.mrb[0].mxu0
        %v1652 = vadd.f32 0.0, %v1651
        %v1653 = vpop.f32.mrb[0].mxu0
        %v1654 = vadd.f32 0.0, %v1653
        %1655 = vmatprep.mubr.f32.mxu0 0.0
        %1656 = vmatmul.mubr.f32.gmra.mrb[0].mxu0 %v1517
        %v1657 = vpop.f32.mrb[0].mxu0
        %v1658 = vadd.f32 0.0, %v1657
        %v1659 = vpop.f32.mrb[0].mxu0
        %v1660 = vadd.f32 0.0, %v1659
        %1661 = vmatprep.mubr.f32.mxu0 0.0
        %1662 = vmatmul.mubr.f32.gmra.mrb[0].mxu0 %v1520
        %v1663 = vpop.f32.mrb[0].mxu0
        %v1664 = vadd.f32 0.0, %v1663
        %v1665 = vpop.f32.mrb[0].mxu0
        %v1666 = vadd.f32 0.0, %v1665
        %1667 = vmatprep.mubr.f32.mxu0 0.0
        %1668 = vmatmul.mubr.f32.gmra.mrb[0].mxu0 %v1523
        %v1669 = vpop.f32.mrb[0].mxu0
        %v1670 = vadd.f32 0.0, %v1669
        %v1671 = vpop.f32.mrb[0].mxu0
        %v1672 = vadd.f32 0.0, %v1671
        %1673 = vmatprep.mubr.f32.mxu0 0.0
        %1674 = vmatmul.mubr.f32.gmra.mrb[0].mxu0 %v1526
        %v1675 = vpop.f32.mrb[0].mxu0
        %v1676 = vadd.f32 0.0, %v1675
        %v1677 = vpop.f32.mrb[0].mxu0
        %v1678 = vadd.f32 0.0, %v1677
        %1679 = vmatprep.mubr.f32.mxu0 0.0
        %1680 = vmatmul.mubr.f32.gmra.mrb[0].mxu0 %v1529
        %v1681 = vpop.f32.mrb[0].mxu0
        %v1682 = vadd.f32 0.0, %v1681
        %v1683 = vpop.f32.mrb[0].mxu0
        %v1684 = vadd.f32 0.0, %v1683
        %1685 = vmatprep.mubr.f32.mxu0 0.0
        %1686 = vmatmul.mubr.f32.gmra.mrb[0].mxu0 %v1532
        %v1687 = vpop.f32.mrb[0].mxu0
        %v1688 = vadd.f32 0.0, %v1687
        %v1689 = vpop.f32.mrb[0].mxu0
        %v1690 = vadd.f32 0.0, %v1689
        %1691 = vmatprep.mubr.f32.mxu0 0.0
        %1692 = vmatmul.mubr.f32.gmra.mrb[0].mxu0 %v1535
        %v1693 = vpop.f32.mrb[0].mxu0
        %v1694 = vadd.f32 0.0, %v1693
        %v1695 = vpop.f32.mrb[0].mxu0
        %v1696 = vadd.f32 0.0, %v1695
        %1697 = vmatprep.mubr.f32.mxu0 0.0
        %1698 = vmatmul.mubr.f32.gmra.mrb[0].mxu0 %v1538
        %v1699 = vpop.f32.mrb[0].mxu0
        %v1700 = vadd.f32 0.0, %v1699
        %v1701 = vpop.f32.mrb[0].mxu0
        %v1702 = vadd.f32 0.0, %v1701
        %1703 = vmatprep.mubr.f32.mxu0 0.0
        %1704 = vmatmul.mubr.f32.gmra.mrb[0].mxu0 %v1541
        %v1705 = vpop.f32.mrb[0].mxu0
        %v1706 = vadd.f32 0.0, %v1705
        %v1707 = vpop.f32.mrb[0].mxu0
        %v1708 = vadd.f32 0.0, %v1707
        %1709 = vmatprep.mubr.f32.mxu0 0.0
        %1710 = vmatmul.mubr.f32.gmra.mrb[0].mxu0 %v1544
        %v1711 = vpop.f32.mrb[0].mxu0
        %v1712 = vadd.f32 0.0, %v1711
        %v1713 = vpop.f32.mrb[0].mxu0
        %v1714 = vadd.f32 0.0, %v1713
        %1715 = vmatprep.mubr.f32.mxu0 0.0
        %1716 = vmatmul.mubr.f32.gmra.mrb[0].mxu0 %v1547
        %v1717 = vpop.f32.mrb[0].mxu0
        %v1718 = vadd.f32 0.0, %v1717
        %v1719 = vpop.f32.mrb[0].mxu0
        %v1720 = vadd.f32 0.0, %v1719
        %1721 = vdwg.mxu0
        %1722 = vst [vmem:[%s299] sm:$0xff] %v1616
        %1723 = vst [vmem:[%s299 + $0x8] sm:$0xff] %v1618
        %1724 = vst [vmem:[%s299 + $0x10] sm:$0xff] %v1622
        %1725 = vst [vmem:[%s299 + $0x18] sm:$0xff] %v1624
        %1726 = vst [vmem:[%s299 + $0x20] sm:$0xff] %v1628
        %1727 = vst [vmem:[%s299 + $0x28] sm:$0xff] %v1630
        %1728 = vst [vmem:[%s299 + $0x30] sm:$0xff] %v1634
        %1729 = vst [vmem:[%s299 + $0x38] sm:$0xff] %v1636
        %1730 = vst [vmem:[%s299 + $0x40] sm:$0xff] %v1640
        %1731 = vst [vmem:[%s299 + $0x48] sm:$0xff] %v1642
        %1732 = vst [vmem:[%s299 + $0x50] sm:$0xff] %v1646
        %1733 = vst [vmem:[%s299 + $0x58] sm:$0xff] %v1648
        %1734 = vst [vmem:[%s299 + $0x60] sm:$0xff] %v1652
        %1735 = vst [vmem:[%s299 + $0x68] sm:$0xff] %v1654
        %1736 = vst [vmem:[%s299 + $0x70] sm:$0xff] %v1658
        %1737 = vst [vmem:[%s299 + $0x78] sm:$0xff] %v1660
        %1738 = vst [vmem:[%s299 + $0x80] sm:$0xff] %v1664
        %1739 = vst [vmem:[%s299 + $0x88] sm:$0xff] %v1666
        %1740 = vst [vmem:[%s299 + $0x90] sm:$0xff] %v1670
        %1741 = vst [vmem:[%s299 + $0x98] sm:$0xff] %v1672
        %1742 = vst [vmem:[%s299 + $0xa0] sm:$0xff] %v1676
        %1743 = vst [vmem:[%s299 + $0xa8] sm:$0xff] %v1678
        %1744 = vst [vmem:[%s299 + $0xb0] sm:$0xff] %v1682
        %1745 = vst [vmem:[%s299 + $0xb8] sm:$0xff] %v1684
        %1746 = vst [vmem:[%s299 + $0xc0] sm:$0xff] %v1688
        %1747 = vst [vmem:[%s299 + $0xc8] sm:$0xff] %v1690
        %1748 = vst [vmem:[%s299 + $0xd0] sm:$0xff] %v1694
        %1749 = vst [vmem:[%s299 + $0xd8] sm:$0xff] %v1696
        %1750 = vst [vmem:[%s299 + $0xe0] sm:$0xff] %v1700
        %1751 = vst [vmem:[%s299 + $0xe8] sm:$0xff] %v1702
        %1752 = vst [vmem:[%s299 + $0xf0] sm:$0xff] %v1706
        %1753 = vst [vmem:[%s299 + $0xf8] sm:$0xff] %v1708
        %1754 = vst [vmem:[%s299 + $0x100] sm:$0xff] %v1712
        %1755 = vst [vmem:[%s299 + $0x108] sm:$0xff] %v1714
        %1756 = vst [vmem:[%s299 + $0x110] sm:$0xff] %v1718
        %1757 = vst [vmem:[%s299 + $0x118] sm:$0xff] %v1720
        %s1758 = sand.u32 %s204, 1
        %s1759 = scalar_lea.sflag [#allocation7], %s1758
        %s1760 = sand.u32 %s204, 1
        %s1761 = smul.addr %s1760, 288
        %s1762 = scalar_lea.vmem [#allocation6], %s1761
        // Predicated region
        $region53: #{net_forward.1} parent=51 // pred_check
          %p1763 = pneg %p214
        $region54: #{net_forward.1} parent=51 // pred_check_branch
          %1765 = sbr.rel (%p1763) target = $region56
        $region55: #{net_forward.1} parent=51 // pred_region
          %s1767 = ssub.s32 4608, 4608
          %1768 = vsyncadd %s1759, %s1767
          %s1769 = smul.addr %s23, 36
          %s1770 = smul.addr %s1769, 128
          %s1771 = scalar_lea.hbm %s8, %s1770
          %s1772 = sshll.u32 %s1762, 4
          %s1773 = int_to_ptr.vmem [resolvable:$true] %s1772
          %1778 = dma.vmem_to_hbm [thread:$0]  %s1773, 4608, %s1771, %s1759, 256, 256, 16
        $region56: #{net_forward.1} parent=51 // pred_fallthru
          _
      $region52: #{net_forward.1} parent=5 // pred_fallthru
        _
      %p1779 = scmp.le.s32.totalorder 2, %s18
      // Predicated region
      $region57: #{net_forward.1} parent=5 // pred_check
        %p1780 = pneg %p1779
      $region58: #{net_forward.1} parent=5 // pred_check_branch
        %1782 = sbr.rel (%p1780) target = $region60
      $region59: #{net_forward.1} parent=5 // pred_region
        %s1783 = ssub.s32 %s18, 2
        // Predicated region
        $region61: #{net_forward.1} parent=59 // pred_check
          %p1784 = pneg %p220
        $region62: #{net_forward.1} parent=59 // pred_check_branch
          %1786 = sbr.rel (%p1784) target = $region64
        $region63: #{net_forward.1} parent=59 // pred_region
          %s1787 = sand.u32 %s205, 1
          %s1788 = scalar_lea.sflag [#allocation7], %s1787
          %s1789 = sand.u32 %s205, 1
          %s1790 = smul.addr %s1789, 288
          %s1791 = scalar_lea.vmem [#allocation6], %s1790
          %1792 = dma.done %s1788, 4608
        $region64: #{net_forward.1} parent=59 // pred_fallthru
          _
      $region60: #{net_forward.1} parent=5 // pred_fallthru
        _
    $region6: #{net_forward.1} parent=1 // loop_footer
      %s22 = sadd.s32 1, %s18
    $region7: #{net_forward.1} parent=1 // loop_footer_branch
      %17 = sbr.rel target = $region3
    $region8: #{net_forward.1} parent=1 // loop_exit
      _
    %1793 = vsyncpa [#allocation7], 1
    %s1794 = scalar_lea.sflag [#allocation7], 1
    %1795 = vsyncpa %s1794, 1

</llo_original>
